<compile_context>
chip_gen: v7x
topology: tpu7x:2x2x1
jax: 0.10.0
libtpu: 0.0.40
codegen_flags: <defaults>
</compile_context>

<pallas_src>
import math
import functools

import jax
import jax.numpy as jnp
from jax import lax
from jax.experimental import pallas as pl
from jax.experimental.pallas import tpu as pltpu


def _pick_tile(n: int, preferred: int) -> int:
    """Largest power-of-two-halving of `preferred` that divides n, else n."""
    if n <= preferred:
        return n
    t = preferred
    while t > 8 and n % t != 0:
        t //= 2
    return t if n % t == 0 else n


# ---------------------------------------------------------------------------
# Kernel 1: fused Q/K/V input projections (hoisted out of the flash kernel).
# ---------------------------------------------------------------------------
def _qkv_projection_kernel(xq_ref, xk_ref, xv_ref,
                           wq_ref, bq_ref, wk_ref, bk_ref, wv_ref, bv_ref,
                           qp_ref, kp_ref, vp_ref):
    """One grid step projects one row-tile of q, k and v.

    x*_ref : (TR, D) compute_dtype      w*_ref : (D, D) compute_dtype (x @ W layout)
    b*_ref : (1, D)  f32                out    : (TR, D) compute_dtype
    The 1/sqrt(d_k) attention scale is pre-folded into wq / bq host-side.
    """
    qp_ref[...] = (jnp.dot(xq_ref[...], wq_ref[...],
                           preferred_element_type=jnp.float32)
                   + bq_ref[...]).astype(qp_ref.dtype)
    kp_ref[...] = (jnp.dot(xk_ref[...], wk_ref[...],
                           preferred_element_type=jnp.float32)
                   + bk_ref[...]).astype(kp_ref.dtype)
    vp_ref[...] = (jnp.dot(xv_ref[...], wv_ref[...],
                           preferred_element_type=jnp.float32)
                   + bv_ref[...]).astype(vp_ref.dtype)


def _project_qkv(q, k, v, prepared, *, compute_dtype, block_rows,
                 vmem_limit_bytes):
    """Projected Q (pre-scaled), K, V as (B, S, D) arrays in compute_dtype."""
    B, S, D = q.shape
    R = B * S
    tr = _pick_tile(R, block_rows)

    x_spec = pl.BlockSpec((tr, D), lambda i: (i, 0))
    # Grid-invariant weights/biases (default double-buffering; tiny here —
    # a production kernel with large d_model would also tile the K dimension).
    w_spec = pl.BlockSpec((D, D), lambda i: (0, 0))
    b_spec = pl.BlockSpec((1, D), lambda i: (0, 0))
    out_sds = jax.ShapeDtypeStruct((R, D), compute_dtype)

    qp, kp, vp = pl.pallas_call(
        _qkv_projection_kernel,
        out_shape=(out_sds, out_sds, out_sds),
        grid_spec=pltpu.PrefetchScalarGridSpec(
            num_scalar_prefetch=0,
            grid=(R // tr,),
            in_specs=[x_spec, x_spec, x_spec,
                      w_spec, b_spec, w_spec, b_spec, w_spec, b_spec],
            out_specs=[x_spec, x_spec, x_spec],
        ),
        compiler_params=pltpu.CompilerParams(
            dimension_semantics=("parallel",),
            vmem_limit_bytes=vmem_limit_bytes),
    )(q.reshape(R, D).astype(compute_dtype),
      k.reshape(R, D).astype(compute_dtype),
      v.reshape(R, D).astype(compute_dtype),
      prepared["wq"], prepared["bq"],
      prepared["wk"], prepared["bk"],
      prepared["wv"], prepared["bv"])
    return qp.reshape(B, S, D), kp.reshape(B, S, D), vp.reshape(B, S, D)


# ---------------------------------------------------------------------------
# Kernel 2: flash attention (online softmax) + fused output projection.
# ---------------------------------------------------------------------------
def _mha_flash_kernel(q_ref, k_ref, v_ref, wo_hbm, bo_ref, o_ref,
                      wo_vmem, wo_sem, m_scratch, l_scratch, acc_scratch,
                      *, h: int, d_k: int, compute_dtype, approx_reciprocal: bool):
    """One grid step == (batch b, query tile qi, key/value tile ki).

    q_ref            : (1, TQ, D)   projected & pre-scaled Q (compute_dtype)
    k_ref / v_ref    : (1, TK, D)   projected K / V          (compute_dtype)
    wo_hbm           : (D, D)       output weight, raw HBM ref (pl.ANY)
    bo_ref           : (1, D)       f32 output bias
    wo_vmem          : (D, D)       single-buffered W_o VMEM copy
    m/l_scratch      : (h, TQ, 128) f32 running max / sum (lane-dense)
    acc_scratch      : (TQ, D)      f32 unnormalized P@V, all heads side by side
    """
    ki = pl.program_id(2)
    nk = pl.num_programs(2)

    @pl.when(ki == 0)
    def _init():
        # Single-buffered W_o: DMA started here, waited only in finalize, so it
        # is fully hidden behind the KV stream and uses 1x (not 2x) VMEM.
        pltpu.make_async_copy(wo_hbm, wo_vmem, wo_sem).start()
        m_scratch[...] = jnp.full(m_scratch.shape, -jnp.inf, dtype=jnp.float32)
        l_scratch[...] = jnp.zeros(l_scratch.shape, dtype=jnp.float32)
        acc_scratch[...] = jnp.zeros(acc_scratch.shape, dtype=jnp.float32)

    # Online-softmax update per head.  h is compile-time known and small here.
    # TODO(synk): for h >= 8 move heads to a grid axis (or lax.fori_loop with
    #             pl.ds lane slices) to bound vreg live ranges.
    # NOTE: head slices are lane-aligned when d_k is a multiple of 128; for
    #       d_k < 128 prefer an (h, S, d_k) layout to avoid relayout copies.
    for head in range(h):
        lo = head * d_k
        hi = lo + d_k
        qh = q_ref[0, :, lo:hi]                       # (TQ, d_k) already scaled
        kh = k_ref[0, :, lo:hi]                       # (TK, d_k)
        vh = v_ref[0, :, lo:hi]                       # (TK, d_k)

        # Scores (TQ, TK): contract last dims -> no explicit transpose / XLU.
        s = lax.dot_general(qh, kh, (((1,), (1,)), ((), ())),
                            preferred_element_type=jnp.float32)

        m_prev = m_scratch[head, :, 0:1]              # (TQ, 1)
        l_prev = l_scratch[head, :, 0:1]
        m_new = jnp.maximum(m_prev, jnp.max(s, axis=-1, keepdims=True))
        alpha = jnp.exp(m_prev - m_new)               # (TQ, 1)
        # TODO(synk): on v6e/v7x, if the EUP saturates, compute exp in bf16.
        p = jnp.exp(s - m_new)                        # (TQ, TK) f32
        l_new = alpha * l_prev + jnp.sum(p, axis=-1, keepdims=True)

        pv = jnp.dot(p.astype(compute_dtype), vh,
                     preferred_element_type=jnp.float32)      # (TQ, d_k)
        acc_scratch[:, lo:hi] = alpha * acc_scratch[:, lo:hi] + pv

        # Lane-dense (TQ, 128) stores (unmasked vst) for the running stats.
        m_scratch[head] = jnp.broadcast_to(m_new, m_scratch.shape[1:])
        l_scratch[head] = jnp.broadcast_to(l_new, l_scratch.shape[1:])

    @pl.when(ki == nk - 1)
    def _finalize():
        pltpu.make_async_copy(wo_hbm, wo_vmem, wo_sem).wait()
        # Normalize each head's column slice in place, then ONE lane-dense
        # (TQ, D) @ (D, D) output projection (K = d_model fills the MXU).
        for head in range(h):
            lo = head * d_k
            hi = lo + d_k
            inv_l = pl.reciprocal(l_scratch[head, :, 0:1],
                                  approx=approx_reciprocal)
            acc_scratch[:, lo:hi] = acc_scratch[:, lo:hi] * inv_l
        out = jnp.dot(acc_scratch[...].astype(compute_dtype), wo_vmem[...],
                      preferred_element_type=jnp.float32) + bo_ref[...]
        o_ref[0] = out.astype(o_ref.dtype)


# ---------------------------------------------------------------------------
# Host-side wrappers.
# ---------------------------------------------------------------------------
def prepare_mha_params(params, *, h: int, compute_dtype=jnp.bfloat16):
    """One-time parameter prep — cache the result and reuse across calls.

    * nn.Linear stores weight as (out, in); pre-transpose to x @ W layout.
    * 1/sqrt(d_k) folded into W_q / b_q (removes a per-tile VALU scale).
    * Weights in compute_dtype (halves weight DMA/VMEM); biases stay f32.
    """
    D = params["wq"].shape[0]
    assert D % h == 0, "d_model must be divisible by number of heads"
    scale = 1.0 / math.sqrt(D // h)
    f32 = jnp.float32
    return {
        "wq": (params["wq"].T * scale).astype(compute_dtype),
        "bq": (params["bq"] * scale).reshape(1, D).astype(f32),
        "wk": params["wk"].T.astype(compute_dtype),
        "bk": params["bk"].reshape(1, D).astype(f32),
        "wv": params["wv"].T.astype(compute_dtype),
        "bv": params["bv"].reshape(1, D).astype(f32),
        "wo": params["wo"].T.astype(compute_dtype),
        "bo": params["bo"].reshape(1, D).astype(f32),
    }


def multi_head_attention(q, k, v, prepared, *, h: int,
                         block_q: int = 256, block_k: int = 256,
                         block_proj_rows: int = 256,
                         approx_reciprocal: bool = True,
                         out_dtype=None,
                         # 48 MiB: fits v7x's 64 MiB physical VMEM with headroom
                         # for Mosaic internal scratch; well under v5e/v6e 128 MiB.
                         vmem_limit_bytes: int = 48 * 1024 * 1024):
    """q, k, v: (B, S, D). `prepared` from prepare_mha_params (sets compute dtype)."""
    B, S, D = q.shape
    assert D % h == 0, "d_model must be divisible by number of heads"
    d_k = D // h
    compute_dtype = prepared["wq"].dtype
    out_dtype = q.dtype if out_dtype is None else out_dtype

    # Stage 1: Q/K/V projections — once per (batch, position).
    qp, kp, vp = _project_qkv(q, k, v, prepared,
                              compute_dtype=compute_dtype,
                              block_rows=block_proj_rows,
                              vmem_limit_bytes=vmem_limit_bytes)

    # Stage 2: flash attention + fused output projection.
    tq = _pick_tile(S, block_q)
    tk = _pick_tile(S, block_k)

    kernel = functools.partial(_mha_flash_kernel, h=h, d_k=d_k,
                               compute_dtype=compute_dtype,
                               approx_reciprocal=approx_reciprocal)

    q_spec = pl.BlockSpec((1, tq, D), lambda b, qi, ki: (b, qi, 0))
    # TODO(synk): if the KV tile DMA becomes exposed, bump these to
    #             pipeline_mode=pl.Buffered(3).
    kv_spec = pl.BlockSpec((1, tk, D), lambda b, qi, ki: (b, ki, 0))
    wo_spec = pl.BlockSpec(memory_space=pl.ANY)   # single-buffered via manual DMA
    bo_spec = pl.BlockSpec((1, D), lambda b, qi, ki: (0, 0))
    o_spec = pl.BlockSpec((1, tq, D), lambda b, qi, ki: (b, qi, 0))

    grid = (B, S // tq, S // tk)

    return pl.pallas_call(
        kernel,
        out_shape=jax.ShapeDtypeStruct((B, S, D), out_dtype),
        grid_spec=pltpu.PrefetchScalarGridSpec(
            num_scalar_prefetch=0,
            grid=grid,
            in_specs=[q_spec, kv_spec, kv_spec, wo_spec, bo_spec],
            out_specs=o_spec,
            scratch_shapes=[
                pltpu.VMEM((D, D), compute_dtype),       # single-buffered W_o
                pltpu.SemaphoreType.DMA(()),             # W_o DMA completion
                pltpu.VMEM((h, tq, 128), jnp.float32),   # running max (lane-dense)
                pltpu.VMEM((h, tq, 128), jnp.float32),   # running sum (lane-dense)
                pltpu.VMEM((tq, D), jnp.float32),        # unnormalized P@V acc
            ],
        ),
        compiler_params=pltpu.CompilerParams(
            dimension_semantics=("parallel", "parallel", "arbitrary"),
            vmem_limit_bytes=vmem_limit_bytes),
    )(qp, kp, vp, prepared["wo"], prepared["bo"])


def _reference_mha(q, k, v, params, *, h: int):
    """Pure-JAX f32 reference mirroring the PyTorch forward (eval, no mask)."""
    B, S, D = q.shape
    d_k = D // h
    hp = jax.lax.Precision.HIGHEST

    def lin(x, w, b):
        return jnp.einsum("bsd,od->bso", x, w, precision=hp) + b

    qp = lin(q, params["wq"], params["bq"]).reshape(B, S, h, d_k).transpose(0, 2, 1, 3)
    kp = lin(k, params["wk"], params["bk"]).reshape(B, S, h, d_k).transpose(0, 2, 1, 3)
    vp = lin(v, params["wv"], params["bv"]).reshape(B, S, h, d_k).transpose(0, 2, 1, 3)

    scores = jnp.einsum("bhqd,bhkd->bhqk", qp, kp, precision=hp) / math.sqrt(d_k)
    probs = jax.nn.softmax(scores, axis=-1)
    x = jnp.einsum("bhqk,bhkd->bhqd", probs, vp, precision=hp)
    x = x.transpose(0, 2, 1, 3).reshape(B, S, D)
    return lin(x, params["wo"], params["bo"])


if __name__ == "__main__":
    # Small but kernel-meaningful shapes: with 256-wide tiles this gives
    # 2 query tiles x 2 KV tiles per batch element (exercises the online
    # softmax accumulation path) and lane-aligned heads (d_k = 128).
    B, S, D, H = 2, 512, 256, 2

    key = jax.random.PRNGKey(0)
    ks = jax.random.split(key, 11)

    bound = 1.0 / math.sqrt(D)
    params = {
        "wq": jax.random.uniform(ks[0], (D, D), jnp.float32, -bound, bound),
        "bq": jax.random.uniform(ks[1], (D,), jnp.float32, -bound, bound),
        "wk": jax.random.uniform(ks[2], (D, D), jnp.float32, -bound, bound),
        "bk": jax.random.uniform(ks[3], (D,), jnp.float32, -bound, bound),
        "wv": jax.random.uniform(ks[4], (D, D), jnp.float32, -bound, bound),
        "bv": jax.random.uniform(ks[5], (D,), jnp.float32, -bound, bound),
        "wo": jax.random.uniform(ks[6], (D, D), jnp.float32, -bound, bound),
        "bo": jax.random.uniform(ks[7], (D,), jnp.float32, -bound, bound),
    }

    q = jax.random.normal(ks[8], (B, S, D), jnp.float32)
    k = jax.random.normal(ks[9], (B, S, D), jnp.float32)
    v = jax.random.normal(ks[10], (B, S, D), jnp.float32)

    # Recommended fast configuration: bf16 MXU operands, approx reciprocal.
    prep_bf16 = prepare_mha_params(params, h=H, compute_dtype=jnp.bfloat16)
    out_bf16 = multi_head_attention(q, k, v, prep_bf16, h=H)
    out_bf16 = jax.block_until_ready(out_bf16)

    # Full-precision configuration for a tighter numerical check.
    prep_f32 = prepare_mha_params(params, h=H, compute_dtype=jnp.float32)
    out_f32 = multi_head_attention(q, k, v, prep_f32, h=H,
                                   approx_reciprocal=False)
    out_f32 = jax.block_until_ready(out_f32)

    ref = _reference_mha(q, k, v, params, h=H)

    assert out_bf16.shape == (B, S, D)
    assert out_f32.shape == (B, S, D)
    # Tolerances allow for MXU matmul pass modes and online-softmax
    # reassociation; f32 path is checked much tighter than the bf16 path.
    assert jnp.allclose(out_f32, ref, atol=1e-2, rtol=1e-2), \
        "f32 kernel mismatch vs pure-JAX reference"
    assert jnp.allclose(out_bf16.astype(jnp.float32), ref, atol=5e-2, rtol=5e-2), \
        "bf16 kernel mismatch vs pure-JAX reference"

    print("KERNEL_OK")
</pallas_src>

<mosaic_0001>
module attributes {stable_mosaic.version = 11 : i64} {
  func.func @_qkv_projection_kernel(%arg0: i32, %arg1: memref<256x256xbf16, #tpu.memory_space<vmem>>, %arg2: memref<256x256xbf16, #tpu.memory_space<vmem>>, %arg3: memref<256x256xbf16, #tpu.memory_space<vmem>>, %arg4: memref<256x256xbf16, #tpu.memory_space<vmem>>, %arg5: memref<1x256xf32, #tpu.memory_space<vmem>>, %arg6: memref<256x256xbf16, #tpu.memory_space<vmem>>, %arg7: memref<1x256xf32, #tpu.memory_space<vmem>>, %arg8: memref<256x256xbf16, #tpu.memory_space<vmem>>, %arg9: memref<1x256xf32, #tpu.memory_space<vmem>>, %arg10: memref<256x256xbf16, #tpu.memory_space<vmem>>, %arg11: memref<256x256xbf16, #tpu.memory_space<vmem>>, %arg12: memref<256x256xbf16, #tpu.memory_space<vmem>>) attributes {dimension_semantics = [#tpu.dimension_semantics<parallel>], iteration_bounds = array<i64: 4>, scalar_prefetch = 0 : i64, scratch_operands = 0 : i64, tpu.core_type = #tpu.core_type<tc>, window_params = [{transform_indices = @transform_0, window_bounds = array<i64: 256, 256>}, {transform_indices = @transform_1, window_bounds = array<i64: 256, 256>}, {transform_indices = @transform_2, window_bounds = array<i64: 256, 256>}, {pipeline_mode = #tpu.pipeline_mode<synchronous>, transform_indices = @transform_3, window_bounds = array<i64: 256, 256>}, {pipeline_mode = #tpu.pipeline_mode<synchronous>, transform_indices = @transform_4, window_bounds = array<i64: 1, 256>}, {pipeline_mode = #tpu.pipeline_mode<synchronous>, transform_indices = @transform_5, window_bounds = array<i64: 256, 256>}, {pipeline_mode = #tpu.pipeline_mode<synchronous>, transform_indices = @transform_6, window_bounds = array<i64: 1, 256>}, {pipeline_mode = #tpu.pipeline_mode<synchronous>, transform_indices = @transform_7, window_bounds = array<i64: 256, 256>}, {pipeline_mode = #tpu.pipeline_mode<synchronous>, transform_indices = @transform_8, window_bounds = array<i64: 1, 256>}, {transform_indices = @transform_9, window_bounds = array<i64: 256, 256>}, {transform_indices = @transform_10, window_bounds = array<i64: 256, 256>}, {transform_indices = @transform_11, window_bounds = array<i64: 256, 256>}]} {
    %c0 = arith.constant 0 : index
    %c0_0 = arith.constant 0 : index
    %0 = vector.load %arg1[%c0, %c0_0] : memref<256x256xbf16, #tpu.memory_space<vmem>>, vector<256x256xbf16>
    %c0_1 = arith.constant 0 : index
    %c0_2 = arith.constant 0 : index
    %1 = vector.load %arg4[%c0_1, %c0_2] : memref<256x256xbf16, #tpu.memory_space<vmem>>, vector<256x256xbf16>
    %cst = arith.constant dense<0.000000e+00> : vector<256x256xf32>
    %2 = tpu.matmul %0, %1, %cst {dimension_numbers = #tpu.dot_dimension_numbers<[1], [0], [0], [1], [0, 0, 1, 1], [], []>} : vector<256x256xbf16>, vector<256x256xbf16>, vector<256x256xf32> -> vector<256x256xf32>
    %c0_3 = arith.constant 0 : index
    %c0_4 = arith.constant 0 : index
    %3 = vector.load %arg5[%c0_3, %c0_4] : memref<1x256xf32, #tpu.memory_space<vmem>>, vector<1x256xf32>
    %4 = vector.broadcast %3 : vector<1x256xf32> to vector<256x256xf32>
    %5 = arith.addf %2, %4 : vector<256x256xf32>
    %6 = arith.truncf %5 : vector<256x256xf32> to vector<256x256xbf16>
    %c0_5 = arith.constant 0 : index
    %c0_6 = arith.constant 0 : index
    %7 = vector.load %arg10[%c0_5, %c0_6] : memref<256x256xbf16, #tpu.memory_space<vmem>>, vector<256x256xbf16>
    tpu.vector_store %arg10[%c0_5, %c0_6], %6 {strides = array<i32>} : memref<256x256xbf16, #tpu.memory_space<vmem>>, vector<256x256xbf16>,
    %c0_7 = arith.constant 0 : index
    %c0_8 = arith.constant 0 : index
    %8 = vector.load %arg2[%c0_7, %c0_8] : memref<256x256xbf16, #tpu.memory_space<vmem>>, vector<256x256xbf16>
    %c0_9 = arith.constant 0 : index
    %c0_10 = arith.constant 0 : index
    %9 = vector.load %arg6[%c0_9, %c0_10] : memref<256x256xbf16, #tpu.memory_space<vmem>>, vector<256x256xbf16>
    %cst_11 = arith.constant dense<0.000000e+00> : vector<256x256xf32>
    %10 = tpu.matmul %8, %9, %cst_11 {dimension_numbers = #tpu.dot_dimension_numbers<[1], [0], [0], [1], [0, 0, 1, 1], [], []>} : vector<256x256xbf16>, vector<256x256xbf16>, vector<256x256xf32> -> vector<256x256xf32>
    %c0_12 = arith.constant 0 : index
    %c0_13 = arith.constant 0 : index
    %11 = vector.load %arg7[%c0_12, %c0_13] : memref<1x256xf32, #tpu.memory_space<vmem>>, vector<1x256xf32>
    %12 = vector.broadcast %11 : vector<1x256xf32> to vector<256x256xf32>
    %13 = arith.addf %10, %12 : vector<256x256xf32>
    %14 = arith.truncf %13 : vector<256x256xf32> to vector<256x256xbf16>
    %c0_14 = arith.constant 0 : index
    %c0_15 = arith.constant 0 : index
    %15 = vector.load %arg11[%c0_14, %c0_15] : memref<256x256xbf16, #tpu.memory_space<vmem>>, vector<256x256xbf16>
    tpu.vector_store %arg11[%c0_14, %c0_15], %14 {strides = array<i32>} : memref<256x256xbf16, #tpu.memory_space<vmem>>, vector<256x256xbf16>,
    %c0_16 = arith.constant 0 : index
    %c0_17 = arith.constant 0 : index
    %16 = vector.load %arg3[%c0_16, %c0_17] : memref<256x256xbf16, #tpu.memory_space<vmem>>, vector<256x256xbf16>
    %c0_18 = arith.constant 0 : index
    %c0_19 = arith.constant 0 : index
    %17 = vector.load %arg8[%c0_18, %c0_19] : memref<256x256xbf16, #tpu.memory_space<vmem>>, vector<256x256xbf16>
    %cst_20 = arith.constant dense<0.000000e+00> : vector<256x256xf32>
    %18 = tpu.matmul %16, %17, %cst_20 {dimension_numbers = #tpu.dot_dimension_numbers<[1], [0], [0], [1], [0, 0, 1, 1], [], []>} : vector<256x256xbf16>, vector<256x256xbf16>, vector<256x256xf32> -> vector<256x256xf32>
    %c0_21 = arith.constant 0 : index
    %c0_22 = arith.constant 0 : index
    %19 = vector.load %arg9[%c0_21, %c0_22] : memref<1x256xf32, #tpu.memory_space<vmem>>, vector<1x256xf32>
    %20 = vector.broadcast %19 : vector<1x256xf32> to vector<256x256xf32>
    %21 = arith.addf %18, %20 : vector<256x256xf32>
    %22 = arith.truncf %21 : vector<256x256xf32> to vector<256x256xbf16>
    %c0_23 = arith.constant 0 : index
    %c0_24 = arith.constant 0 : index
    %23 = vector.load %arg12[%c0_23, %c0_24] : memref<256x256xbf16, #tpu.memory_space<vmem>>, vector<256x256xbf16>
    tpu.vector_store %arg12[%c0_23, %c0_24], %22 {strides = array<i32>} : memref<256x256xbf16, #tpu.memory_space<vmem>>, vector<256x256xbf16>,
    return
  }
  func.func @transform_0(%arg0: i32) -> (i32, i32) {
    %c0_i32 = arith.constant 0 : i32
    %c0_i32_0 = arith.constant 0 : i32
    return %arg0, %c0_i32 : i32, i32
  }
  func.func @transform_1(%arg0: i32) -> (i32, i32) {
    %c0_i32 = arith.constant 0 : i32
    %c0_i32_0 = arith.constant 0 : i32
    return %arg0, %c0_i32 : i32, i32
  }
  func.func @transform_2(%arg0: i32) -> (i32, i32) {
    %c0_i32 = arith.constant 0 : i32
    %c0_i32_0 = arith.constant 0 : i32
    return %arg0, %c0_i32 : i32, i32
  }
  func.func @transform_3(%arg0: i32) -> (i32, i32) {
    %c0_i32 = arith.constant 0 : i32
    %c0_i32_0 = arith.constant 0 : i32
    %c0_i32_1 = arith.constant 0 : i32
    return %c0_i32, %c0_i32_0 : i32, i32
  }
  func.func @transform_4(%arg0: i32) -> (i32, i32) {
    %c0_i32 = arith.constant 0 : i32
    %c0_i32_0 = arith.constant 0 : i32
    %c0_i32_1 = arith.constant 0 : i32
    return %c0_i32, %c0_i32_0 : i32, i32
  }
  func.func @transform_5(%arg0: i32) -> (i32, i32) {
    %c0_i32 = arith.constant 0 : i32
    %c0_i32_0 = arith.constant 0 : i32
    %c0_i32_1 = arith.constant 0 : i32
    return %c0_i32, %c0_i32_0 : i32, i32
  }
  func.func @transform_6(%arg0: i32) -> (i32, i32) {
    %c0_i32 = arith.constant 0 : i32
    %c0_i32_0 = arith.constant 0 : i32
    %c0_i32_1 = arith.constant 0 : i32
    return %c0_i32, %c0_i32_0 : i32, i32
  }
  func.func @transform_7(%arg0: i32) -> (i32, i32) {
    %c0_i32 = arith.constant 0 : i32
    %c0_i32_0 = arith.constant 0 : i32
    %c0_i32_1 = arith.constant 0 : i32
    return %c0_i32, %c0_i32_0 : i32, i32
  }
  func.func @transform_8(%arg0: i32) -> (i32, i32) {
    %c0_i32 = arith.constant 0 : i32
    %c0_i32_0 = arith.constant 0 : i32
    %c0_i32_1 = arith.constant 0 : i32
    return %c0_i32, %c0_i32_0 : i32, i32
  }
  func.func @transform_9(%arg0: i32) -> (i32, i32) {
    %c0_i32 = arith.constant 0 : i32
    %c0_i32_0 = arith.constant 0 : i32
    return %arg0, %c0_i32 : i32, i32
  }
  func.func @transform_10(%arg0: i32) -> (i32, i32) {
    %c0_i32 = arith.constant 0 : i32
    %c0_i32_0 = arith.constant 0 : i32
    return %arg0, %c0_i32 : i32, i32
  }
  func.func @transform_11(%arg0: i32) -> (i32, i32) {
    %c0_i32 = arith.constant 0 : i32
    %c0_i32_0 = arith.constant 0 : i32
    return %arg0, %c0_i32 : i32, i32
  }
}

</mosaic_0001>

<llo_original>
// kernel: tpu_custom_call.1
$region0: #{tpu_custom_call.1}
  #allocation0 [shape = 'u32[]', space=smem, size = 0x4, offset = 0x4, fixed_abs, tag = 'smem constant byte address 0x4 - core index']
  #allocation1 [shape = 'u32[144,128]{1,0:T(1,128)}', space=vmem, size = 0x12000, scoped, tag = 'internal scratch']
  %s0 = inlined_call_operand.hbm [shape: bf16[1024,256], index: 0, kind: input, shape index: {}]
  %s1 = inlined_call_operand.hbm [shape: bf16[1024,256], index: 1, kind: input, shape index: {}]
  %s2 = inlined_call_operand.hbm [shape: bf16[1024,256], index: 2, kind: input, shape index: {}]
  %s3 = inlined_call_operand.hbm [shape: bf16[256,256], index: 3, kind: input, shape index: {}]
  %s4 = inlined_call_operand.vmem [shape: f32[1,256], index: 4, kind: input, shape index: {}]
  %s5 = inlined_call_operand.hbm [shape: bf16[256,256], index: 5, kind: input, shape index: {}]
  %s6 = inlined_call_operand.vmem [shape: f32[1,256], index: 6, kind: input, shape index: {}]
  %s7 = inlined_call_operand.hbm [shape: bf16[256,256], index: 7, kind: input, shape index: {}]
  %s8 = inlined_call_operand.vmem [shape: f32[1,256], index: 8, kind: input, shape index: {}]
  %s9 = inlined_call_operand.hbm [shape: bf16[1024,256], index: 9, kind: output, shape index: {0}]
  %s10 = inlined_call_operand.hbm [shape: bf16[1024,256], index: 10, kind: output, shape index: {1}]
  %s11 = inlined_call_operand.hbm [shape: bf16[1024,256], index: 11, kind: output, shape index: {2}]
  %12 = xla_tuple %s9, %s10, %s11
  %s13 = sld [smem:[#allocation0]]
  $region109: #{tpu_custom_call.1} parent=0
    _
  %s15 = ssub.s32 1, %s13
  %s16 = scalar_select 0, %s15, %s13
  $region1: #{tpu_custom_call.1} parent=0
    #allocation2 [shape = 'u8[262144]{0}', space=vmem, size = 0x40000, scoped, tag = 'input window, operand 0']
    #allocation3 [shape = 's32[2]{0}', space=sflag, size = 0x8, scoped, tag = 'scoped memory for tpu_custom_call.1']
    #allocation4 [shape = 's32[2]{0}', space=sflag, size = 0x8, scoped, tag = 'scoped memory for tpu_custom_call.1']
    #allocation5 [shape = 'u8[262144]{0}', space=vmem, size = 0x40000, scoped, tag = 'input window, operand 1']
    #allocation6 [shape = 's32[2]{0}', space=sflag, size = 0x8, scoped, tag = 'scoped memory for tpu_custom_call.1']
    #allocation7 [shape = 'u8[262144]{0}', space=vmem, size = 0x40000, scoped, tag = 'input window, operand 2']
    #allocation8 [shape = 'u8[131072]{0}', space=vmem, size = 0x20000, scoped, tag = 'input window, operand 3, single buffered']
    #allocation9 [shape = 's32[1]{0}', space=sflag, size = 0x4, scoped, tag = 'scoped memory for tpu_custom_call.1']
    #allocation10 [shape = 'u8[131072]{0}', space=vmem, size = 0x20000, scoped, tag = 'input window, operand 5, single buffered']
    #allocation11 [shape = 'u8[131072]{0}', space=vmem, size = 0x20000, scoped, tag = 'input window, operand 7, single buffered']
    #allocation12 [shape = 's32[1]{0}', space=sflag, size = 0x4, scoped, tag = 'scoped memory for tpu_custom_call.1']
    #allocation13 [shape = 'u8[262144]{0}', space=vmem, size = 0x40000, scoped, tag = 'output window, operand 0']
    #allocation14 [shape = 'u8[262144]{0}', space=vmem, size = 0x40000, scoped, tag = 'output window, operand 1']
    #allocation15 [shape = 's32[2]{0}', space=sflag, size = 0x8, scoped, tag = 'scoped memory for tpu_custom_call.1']
    #allocation16 [shape = 'u8[262144]{0}', space=vmem, size = 0x40000, scoped, tag = 'output window, operand 2']
    %17 = vsyncpa [#allocation3], 0
    %s18 = scalar_lea.sflag [#allocation3], 1
    %19 = vsyncpa %s18, 0
    %20 = vsyncpa [#allocation6], 0
    %s21 = scalar_lea.sflag [#allocation6], 1
    %22 = vsyncpa %s21, 0
    %23 = vsyncpa [#allocation9], 0
    %24 = vsyncpa [#allocation12], 0
    %25 = vsyncpa [#allocation4], 0
    %s26 = scalar_lea.sflag [#allocation4], 1
    %27 = vsyncpa %s26, 0
    %28 = vsyncpa [#allocation15], 0
    %s29 = scalar_lea.sflag [#allocation15], 1
    %30 = vsyncpa %s29, 0
    loop: start=0, step=1, limit=6
    $region2: #{tpu_custom_call.1} parent=1 // loop_pre_header
      _
    $region3: #{tpu_custom_call.1} parent=1 // loop_header
      %s32 = sphi 0, %s36
      %p33 = scmp.ge.s32.totalorder %s32, 6
      %s42 = sphi 0, %s44
      %s45 = sphi 0, %s42
      %s46 = sphi 0, %s45
      %s62 = sphi 0, %s46
      %s68 = sphi 0, %s70
      %s71 = sphi 0, %s68
      %s72 = sphi 0, %s71
      %s88 = sphi 0, %s72
      %s94 = sphi 0, %s96
      %s97 = sphi 0, %s94
      %s98 = sphi 0, %s97
      %s114 = sphi 0, %s98
      %s118 = sphi 0, %s118
      %s120 = sphi 0, %s118
      %s121 = sphi 0, %s120
      %s135 = sphi 0, %s121
      %s139 = sphi 0, %s139
      %s141 = sphi 0, %s139
      %s142 = sphi 0, %s141
      %s156 = sphi 0, %s142
      %s160 = sphi 0, %s160
      %s162 = sphi 0, %s160
      %s163 = sphi 0, %s162
      %s177 = sphi 0, %s163
      %s181 = sphi 0, %s181
      %s183 = sphi 0, %s181
      %s184 = sphi 0, %s183
      %s198 = sphi 0, %s184
      %s202 = sphi 0, %s202
      %s204 = sphi 0, %s202
      %s205 = sphi 0, %s204
      %s219 = sphi 0, %s205
      %s223 = sphi 0, %s223
      %s225 = sphi 0, %s223
      %s226 = sphi 0, %s225
      %s240 = sphi 0, %s226
      %s246 = sphi 0, %s248
      %s249 = sphi 0, %s246
      %s250 = sphi 0, %s249
      %s266 = sphi 0, %s250
      %s272 = sphi 0, %s274
      %s275 = sphi 0, %s272
      %s276 = sphi 0, %s275
      %s292 = sphi 0, %s276
      %s298 = sphi 0, %s300
      %s301 = sphi 0, %s298
      %s302 = sphi 0, %s301
      %s318 = sphi 0, %s302
    $region4: #{tpu_custom_call.1} parent=1 // loop_header_branch
      %35 = sbr.rel (%p33) target = $region8
    $region5: #{tpu_custom_call.1} parent=1 // loop_body
      %s37 = ssub.s32 %s32, 1
      %s38 = ssub.s32 %s32, 2
      %s39 = sadd.s32 %s32, 1
      %s40 = ssub.s32 %s32, %s39
      %p41 = scmp.eq.s32.totalorder %s40, 0
      %s43 = sadd.s32 %s42, 1
      %s44 = scalar_select %p41, %s42, %s43
      %p47 = pneg %p41
      %p48 = scmp.eq.s32.totalorder %s32, 3
      %p49 = por %p47, %p48
      %p50 = scmp.ne.s32.totalorder %s42, %s45
      %p51 = scmp.eq.s32.totalorder %s32, 0
      %p52 = por %p50, %p51
      %p53 = scmp.ne.s32.totalorder %s42, %s45
      %p54 = scmp.eq.s32.totalorder %s37, 3
      %p55 = por %p53, %p54
      %p56 = scmp.ne.s32.totalorder %s45, %s46
      %p57 = scmp.eq.s32.totalorder %s37, 0
      %p58 = por %p56, %p57
      %p59 = scmp.ne.s32.totalorder %s45, %s46
      %p60 = scmp.eq.s32.totalorder %s38, 3
      %p61 = por %p59, %p60
      %p63 = scmp.ne.s32.totalorder %s46, %s62
      %p64 = scmp.eq.s32.totalorder %s38, 0
      %p65 = por %p63, %p64
      %s66 = ssub.s32 %s32, %s39
      %p67 = scmp.eq.s32.totalorder %s66, 0
      %s69 = sadd.s32 %s68, 1
      %s70 = scalar_select %p67, %s68, %s69
      %p73 = pneg %p67
      %p74 = scmp.eq.s32.totalorder %s32, 3
      %p75 = por %p73, %p74
      %p76 = scmp.ne.s32.totalorder %s68, %s71
      %p77 = scmp.eq.s32.totalorder %s32, 0
      %p78 = por %p76, %p77
      %p79 = scmp.ne.s32.totalorder %s68, %s71
      %p80 = scmp.eq.s32.totalorder %s37, 3
      %p81 = por %p79, %p80
      %p82 = scmp.ne.s32.totalorder %s71, %s72
      %p83 = scmp.eq.s32.totalorder %s37, 0
      %p84 = por %p82, %p83
      %p85 = scmp.ne.s32.totalorder %s71, %s72
      %p86 = scmp.eq.s32.totalorder %s38, 3
      %p87 = por %p85, %p86
      %p89 = scmp.ne.s32.totalorder %s72, %s88
      %p90 = scmp.eq.s32.totalorder %s38, 0
      %p91 = por %p89, %p90
      %s92 = ssub.s32 %s32, %s39
      %p93 = scmp.eq.s32.totalorder %s92, 0
      %s95 = sadd.s32 %s94, 1
      %s96 = scalar_select %p93, %s94, %s95
      %p99 = pneg %p93
      %p100 = scmp.eq.s32.totalorder %s32, 3
      %p101 = por %p99, %p100
      %p102 = scmp.ne.s32.totalorder %s94, %s97
      %p103 = scmp.eq.s32.totalorder %s32, 0
      %p104 = por %p102, %p103
      %p105 = scmp.ne.s32.totalorder %s94, %s97
      %p106 = scmp.eq.s32.totalorder %s37, 3
      %p107 = por %p105, %p106
      %p108 = scmp.ne.s32.totalorder %s97, %s98
      %p109 = scmp.eq.s32.totalorder %s37, 0
      %p110 = por %p108, %p109
      %p111 = scmp.ne.s32.totalorder %s97, %s98
      %p112 = scmp.eq.s32.totalorder %s38, 3
      %p113 = por %p111, %p112
      %p115 = scmp.ne.s32.totalorder %s98, %s114
      %p116 = scmp.eq.s32.totalorder %s38, 0
      %p117 = por %p115, %p116
      %s119 = sadd.s32 %s118, 1
      %p122 = scmp.eq.s32.totalorder %s32, 3
      %p123 = scmp.ne.s32.totalorder %s118, %s120
      %p124 = scmp.eq.s32.totalorder %s32, 0
      %p125 = por %p123, %p124
      %p126 = scmp.ne.s32.totalorder %s118, %s120
      %p127 = scmp.eq.s32.totalorder %s37, 3
      %p128 = por %p126, %p127
      %p129 = scmp.ne.s32.totalorder %s120, %s121
      %p130 = scmp.eq.s32.totalorder %s37, 0
      %p131 = por %p129, %p130
      %p132 = scmp.ne.s32.totalorder %s120, %s121
      %p133 = scmp.eq.s32.totalorder %s38, 3
      %p134 = por %p132, %p133
      %p136 = scmp.ne.s32.totalorder %s121, %s135
      %p137 = scmp.eq.s32.totalorder %s38, 0
      %p138 = por %p136, %p137
      %s140 = sadd.s32 %s139, 1
      %p143 = scmp.eq.s32.totalorder %s32, 3
      %p144 = scmp.ne.s32.totalorder %s139, %s141
      %p145 = scmp.eq.s32.totalorder %s32, 0
      %p146 = por %p144, %p145
      %p147 = scmp.ne.s32.totalorder %s139, %s141
      %p148 = scmp.eq.s32.totalorder %s37, 3
      %p149 = por %p147, %p148
      %p150 = scmp.ne.s32.totalorder %s141, %s142
      %p151 = scmp.eq.s32.totalorder %s37, 0
      %p152 = por %p150, %p151
      %p153 = scmp.ne.s32.totalorder %s141, %s142
      %p154 = scmp.eq.s32.totalorder %s38, 3
      %p155 = por %p153, %p154
      %p157 = scmp.ne.s32.totalorder %s142, %s156
      %p158 = scmp.eq.s32.totalorder %s38, 0
      %p159 = por %p157, %p158
      %s161 = sadd.s32 %s160, 1
      %p164 = scmp.eq.s32.totalorder %s32, 3
      %p165 = scmp.ne.s32.totalorder %s160, %s162
      %p166 = scmp.eq.s32.totalorder %s32, 0
      %p167 = por %p165, %p166
      %p168 = scmp.ne.s32.totalorder %s160, %s162
      %p169 = scmp.eq.s32.totalorder %s37, 3
      %p170 = por %p168, %p169
      %p171 = scmp.ne.s32.totalorder %s162, %s163
      %p172 = scmp.eq.s32.totalorder %s37, 0
      %p173 = por %p171, %p172
      %p174 = scmp.ne.s32.totalorder %s162, %s163
      %p175 = scmp.eq.s32.totalorder %s38, 3
      %p176 = por %p174, %p175
      %p178 = scmp.ne.s32.totalorder %s163, %s177
      %p179 = scmp.eq.s32.totalorder %s38, 0
      %p180 = por %p178, %p179
      %s182 = sadd.s32 %s181, 1
      %p185 = scmp.eq.s32.totalorder %s32, 3
      %p186 = scmp.ne.s32.totalorder %s181, %s183
      %p187 = scmp.eq.s32.totalorder %s32, 0
      %p188 = por %p186, %p187
      %p189 = scmp.ne.s32.totalorder %s181, %s183
      %p190 = scmp.eq.s32.totalorder %s37, 3
      %p191 = por %p189, %p190
      %p192 = scmp.ne.s32.totalorder %s183, %s184
      %p193 = scmp.eq.s32.totalorder %s37, 0
      %p194 = por %p192, %p193
      %p195 = scmp.ne.s32.totalorder %s183, %s184
      %p196 = scmp.eq.s32.totalorder %s38, 3
      %p197 = por %p195, %p196
      %p199 = scmp.ne.s32.totalorder %s184, %s198
      %p200 = scmp.eq.s32.totalorder %s38, 0
      %p201 = por %p199, %p200
      %s203 = sadd.s32 %s202, 1
      %p206 = scmp.eq.s32.totalorder %s32, 3
      %p207 = scmp.ne.s32.totalorder %s202, %s204
      %p208 = scmp.eq.s32.totalorder %s32, 0
      %p209 = por %p207, %p208
      %p210 = scmp.ne.s32.totalorder %s202, %s204
      %p211 = scmp.eq.s32.totalorder %s37, 3
      %p212 = por %p210, %p211
      %p213 = scmp.ne.s32.totalorder %s204, %s205
      %p214 = scmp.eq.s32.totalorder %s37, 0
      %p215 = por %p213, %p214
      %p216 = scmp.ne.s32.totalorder %s204, %s205
      %p217 = scmp.eq.s32.totalorder %s38, 3
      %p218 = por %p216, %p217
      %p220 = scmp.ne.s32.totalorder %s205, %s219
      %p221 = scmp.eq.s32.totalorder %s38, 0
      %p222 = por %p220, %p221
      %s224 = sadd.s32 %s223, 1
      %p227 = scmp.eq.s32.totalorder %s32, 3
      %p228 = scmp.ne.s32.totalorder %s223, %s225
      %p229 = scmp.eq.s32.totalorder %s32, 0
      %p230 = por %p228, %p229
      %p231 = scmp.ne.s32.totalorder %s223, %s225
      %p232 = scmp.eq.s32.totalorder %s37, 3
      %p233 = por %p231, %p232
      %p234 = scmp.ne.s32.totalorder %s225, %s226
      %p235 = scmp.eq.s32.totalorder %s37, 0
      %p236 = por %p234, %p235
      %p237 = scmp.ne.s32.totalorder %s225, %s226
      %p238 = scmp.eq.s32.totalorder %s38, 3
      %p239 = por %p237, %p238
      %p241 = scmp.ne.s32.totalorder %s226, %s240
      %p242 = scmp.eq.s32.totalorder %s38, 0
      %p243 = por %p241, %p242
      %s244 = ssub.s32 %s32, %s39
      %p245 = scmp.eq.s32.totalorder %s244, 0
      %s247 = sadd.s32 %s246, 1
      %s248 = scalar_select %p245, %s246, %s247
      %p251 = pneg %p245
      %p252 = scmp.eq.s32.totalorder %s32, 3
      %p253 = por %p251, %p252
      %p254 = scmp.ne.s32.totalorder %s246, %s249
      %p255 = scmp.eq.s32.totalorder %s32, 0
      %p256 = por %p254, %p255
      %p257 = scmp.ne.s32.totalorder %s246, %s249
      %p258 = scmp.eq.s32.totalorder %s37, 3
      %p259 = por %p257, %p258
      %p260 = scmp.ne.s32.totalorder %s249, %s250
      %p261 = scmp.eq.s32.totalorder %s37, 0
      %p262 = por %p260, %p261
      %p263 = scmp.ne.s32.totalorder %s249, %s250
      %p264 = scmp.eq.s32.totalorder %s38, 3
      %p265 = por %p263, %p264
      %p267 = scmp.ne.s32.totalorder %s250, %s266
      %p268 = scmp.eq.s32.totalorder %s38, 0
      %p269 = por %p267, %p268
      %s270 = ssub.s32 %s32, %s39
      %p271 = scmp.eq.s32.totalorder %s270, 0
      %s273 = sadd.s32 %s272, 1
      %s274 = scalar_select %p271, %s272, %s273
      %p277 = pneg %p271
      %p278 = scmp.eq.s32.totalorder %s32, 3
      %p279 = por %p277, %p278
      %p280 = scmp.ne.s32.totalorder %s272, %s275
      %p281 = scmp.eq.s32.totalorder %s32, 0
      %p282 = por %p280, %p281
      %p283 = scmp.ne.s32.totalorder %s272, %s275
      %p284 = scmp.eq.s32.totalorder %s37, 3
      %p285 = por %p283, %p284
      %p286 = scmp.ne.s32.totalorder %s275, %s276
      %p287 = scmp.eq.s32.totalorder %s37, 0
      %p288 = por %p286, %p287
      %p289 = scmp.ne.s32.totalorder %s275, %s276
      %p290 = scmp.eq.s32.totalorder %s38, 3
      %p291 = por %p289, %p290
      %p293 = scmp.ne.s32.totalorder %s276, %s292
      %p294 = scmp.eq.s32.totalorder %s38, 0
      %p295 = por %p293, %p294
      %s296 = ssub.s32 %s32, %s39
      %p297 = scmp.eq.s32.totalorder %s296, 0
      %s299 = sadd.s32 %s298, 1
      %s300 = scalar_select %p297, %s298, %s299
      %p303 = pneg %p297
      %p304 = scmp.eq.s32.totalorder %s32, 3
      %p305 = por %p303, %p304
      %p306 = scmp.ne.s32.totalorder %s298, %s301
      %p307 = scmp.eq.s32.totalorder %s32, 0
      %p308 = por %p306, %p307
      %p309 = scmp.ne.s32.totalorder %s298, %s301
      %p310 = scmp.eq.s32.totalorder %s37, 3
      %p311 = por %p309, %p310
      %p312 = scmp.ne.s32.totalorder %s301, %s302
      %p313 = scmp.eq.s32.totalorder %s37, 0
      %p314 = por %p312, %p313
      %p315 = scmp.ne.s32.totalorder %s301, %s302
      %p316 = scmp.eq.s32.totalorder %s38, 3
      %p317 = por %p315, %p316
      %p319 = scmp.ne.s32.totalorder %s302, %s318
      %p320 = scmp.eq.s32.totalorder %s38, 0
      %p321 = por %p319, %p320
      %p322 = scmp.le.s32.totalorder 1, %s32
      %p323 = scmp.lt.s32.totalorder %s32, 5
      %p324 = pnand %p322, %p323
      %p325 = pneg %p324
      // Predicated region
      $region9: #{tpu_custom_call.1} parent=5 // pred_check
        _
      $region10: #{tpu_custom_call.1} parent=5 // pred_check_branch
        %327 = sbr.rel (%p324) target = $region12
      $region11: #{tpu_custom_call.1} parent=5 // pred_region
        %s328 = ssub.s32 %s32, 1
        // Predicated region
        $region13: #{tpu_custom_call.1} parent=11 // pred_check
          %p329 = pneg %p131
        $region14: #{tpu_custom_call.1} parent=11 // pred_check_branch
          %331 = sbr.rel (%p329) target = $region16
        $region15: #{tpu_custom_call.1} parent=11 // pred_region
          %s333 = ssub.s32 4096, 4096
          %334 = vsyncadd [#allocation9], %s333
          %s335 = sshll.u32 [#allocation8], 4
          %s336 = int_to_ptr.vmem [resolvable:$true] %s335
          %341 = dma.hbm_to_vmem [thread:$0]  %s3, 4096, %s336, [#allocation9], 128, 128, 8
        $region16: #{tpu_custom_call.1} parent=11 // pred_fallthru
          _
        // Predicated region
        $region17: #{tpu_custom_call.1} parent=11 // pred_check
          %p342 = pneg %p152
        $region18: #{tpu_custom_call.1} parent=11 // pred_check_branch
          %344 = sbr.rel (%p342) target = $region20
        $region19: #{tpu_custom_call.1} parent=11 // pred_region
          _
        $region20: #{tpu_custom_call.1} parent=11 // pred_fallthru
          _
        // Predicated region
        $region21: #{tpu_custom_call.1} parent=11 // pred_check
          %p345 = pneg %p173
        $region22: #{tpu_custom_call.1} parent=11 // pred_check_branch
          %347 = sbr.rel (%p345) target = $region24
        $region23: #{tpu_custom_call.1} parent=11 // pred_region
          %s349 = ssub.s32 4096, 4096
          %350 = vsyncadd [#allocation9], %s349
          %s351 = sshll.u32 [#allocation10], 4
          %s352 = int_to_ptr.vmem [resolvable:$true] %s351
          %357 = dma.hbm_to_vmem [thread:$0]  %s5, 4096, %s352, [#allocation9], 128, 128, 8
        $region24: #{tpu_custom_call.1} parent=11 // pred_fallthru
          _
        // Predicated region
        $region25: #{tpu_custom_call.1} parent=11 // pred_check
          %p358 = pneg %p194
        $region26: #{tpu_custom_call.1} parent=11 // pred_check_branch
          %360 = sbr.rel (%p358) target = $region28
        $region27: #{tpu_custom_call.1} parent=11 // pred_region
          _
        $region28: #{tpu_custom_call.1} parent=11 // pred_fallthru
          _
        // Predicated region
        $region29: #{tpu_custom_call.1} parent=11 // pred_check
          %p361 = pneg %p215
        $region30: #{tpu_custom_call.1} parent=11 // pred_check_branch
          %363 = sbr.rel (%p361) target = $region32
        $region31: #{tpu_custom_call.1} parent=11 // pred_region
          %s365 = ssub.s32 4096, 4096
          %366 = vsyncadd [#allocation12], %s365
          %s367 = sshll.u32 [#allocation11], 4
          %s368 = int_to_ptr.vmem [resolvable:$true] %s367
          %373 = dma.hbm_to_vmem [thread:$0]  %s7, 4096, %s368, [#allocation12], 128, 128, 8
        $region32: #{tpu_custom_call.1} parent=11 // pred_fallthru
          _
        // Predicated region
        $region33: #{tpu_custom_call.1} parent=11 // pred_check
          %p374 = pneg %p236
        $region34: #{tpu_custom_call.1} parent=11 // pred_check_branch
          %376 = sbr.rel (%p374) target = $region36
        $region35: #{tpu_custom_call.1} parent=11 // pred_region
          _
        $region36: #{tpu_custom_call.1} parent=11 // pred_fallthru
          _
      $region12: #{tpu_custom_call.1} parent=5 // pred_fallthru
        _
      %p377 = scmp.lt.s32.totalorder %s32, 4
      // Predicated region
      $region37: #{tpu_custom_call.1} parent=5 // pred_check
        %p378 = pneg %p377
      $region38: #{tpu_custom_call.1} parent=5 // pred_check_branch
        %380 = sbr.rel (%p378) target = $region40
      $region39: #{tpu_custom_call.1} parent=5 // pred_region
        // Predicated region
        $region41: #{tpu_custom_call.1} parent=39 // pred_check
          %p381 = pneg %p52
        $region42: #{tpu_custom_call.1} parent=39 // pred_check_branch
          %383 = sbr.rel (%p381) target = $region44
        $region43: #{tpu_custom_call.1} parent=39 // pred_region
          %s384 = sand.u32 %s42, 1
          %s385 = scalar_lea.sflag [#allocation3], %s384
          %s386 = sand.u32 %s42, 1
          %s387 = smul.addr %s386, 256
          %s388 = scalar_lea.vmem [#allocation2], %s387
          %s389 = smul.u32 32, %s32
          %s391 = ssub.s32 4096, 4096
          %392 = vsyncadd %s385, %s391
          %s393 = smul.addr %s389, 2
          %s394 = smul.addr %s393, 64
          %s395 = scalar_lea.hbm %s0, %s394
          %s396 = sshll.u32 %s388, 4
          %s397 = int_to_ptr.vmem [resolvable:$true] %s396
          %402 = dma.hbm_to_vmem [thread:$0]  %s395, 4096, %s397, %s385, 128, 128, 8
        $region44: #{tpu_custom_call.1} parent=39 // pred_fallthru
          _
        // Predicated region
        $region45: #{tpu_custom_call.1} parent=39 // pred_check
          %p403 = pneg %p78
        $region46: #{tpu_custom_call.1} parent=39 // pred_check_branch
          %405 = sbr.rel (%p403) target = $region48
        $region47: #{tpu_custom_call.1} parent=39 // pred_region
          %s406 = sand.u32 %s32, 1
          %s407 = scalar_lea.sflag [#allocation6], %s406
          %s408 = sand.u32 %s68, 1
          %s409 = smul.addr %s408, 256
          %s410 = scalar_lea.vmem [#allocation5], %s409
          %s411 = smul.u32 32, %s32
          %s413 = ssub.s32 4096, 4096
          %414 = vsyncadd %s407, %s413
          %s415 = smul.addr %s411, 2
          %s416 = smul.addr %s415, 64
          %s417 = scalar_lea.hbm %s1, %s416
          %s418 = sshll.u32 %s410, 4
          %s419 = int_to_ptr.vmem [resolvable:$true] %s418
          %424 = dma.hbm_to_vmem [thread:$0]  %s417, 4096, %s419, %s407, 128, 128, 8
        $region48: #{tpu_custom_call.1} parent=39 // pred_fallthru
          _
        // Predicated region
        $region49: #{tpu_custom_call.1} parent=39 // pred_check
          %p425 = pneg %p104
        $region50: #{tpu_custom_call.1} parent=39 // pred_check_branch
          %427 = sbr.rel (%p425) target = $region52
        $region51: #{tpu_custom_call.1} parent=39 // pred_region
          %s428 = sand.u32 %s32, 1
          %s429 = scalar_lea.sflag [#allocation6], %s428
          %s430 = sand.u32 %s94, 1
          %s431 = smul.addr %s430, 256
          %s432 = scalar_lea.vmem [#allocation7], %s431
          %s433 = smul.u32 32, %s32
          %s435 = ssub.s32 4096, 4096
          %436 = vsyncadd %s429, %s435
          %s437 = smul.addr %s433, 2
          %s438 = smul.addr %s437, 64
          %s439 = scalar_lea.hbm %s2, %s438
          %s440 = sshll.u32 %s432, 4
          %s441 = int_to_ptr.vmem [resolvable:$true] %s440
          %446 = dma.hbm_to_vmem [thread:$0]  %s439, 4096, %s441, %s429, 128, 128, 8
        $region52: #{tpu_custom_call.1} parent=39 // pred_fallthru
          _
      $region40: #{tpu_custom_call.1} parent=5 // pred_fallthru
        _
      %p447 = scmp.le.s32.totalorder 1, %s32
      %p448 = scmp.lt.s32.totalorder %s32, 5
      %p449 = pnand %p447, %p448
      %p450 = pneg %p449
      // Predicated region
      $region53: #{tpu_custom_call.1} parent=5 // pred_check
        _
      $region54: #{tpu_custom_call.1} parent=5 // pred_check_branch
        %452 = sbr.rel (%p449) target = $region56
      $region55: #{tpu_custom_call.1} parent=5 // pred_region
        %s453 = ssub.s32 %s32, 1
        %s454 = sand.u32 %s45, 1
        %s455 = scalar_lea.sflag [#allocation3], %s454
        %s456 = sand.u32 %s45, 1
        %s457 = smul.addr %s456, 256
        %s458 = scalar_lea.vmem [#allocation2], %s457
        // Predicated region
        $region57: #{tpu_custom_call.1} parent=55 // pred_check
          %p459 = pneg %p58
        $region58: #{tpu_custom_call.1} parent=55 // pred_check_branch
          %461 = sbr.rel (%p459) target = $region60
        $region59: #{tpu_custom_call.1} parent=55 // pred_region
          %462 = dma.done %s455, 4096
        $region60: #{tpu_custom_call.1} parent=55 // pred_fallthru
          _
        %s463 = sand.u32 %s37, 1
        %s464 = scalar_lea.sflag [#allocation6], %s463
        %s465 = sand.u32 %s71, 1
        %s466 = smul.addr %s465, 256
        %s467 = scalar_lea.vmem [#allocation5], %s466
        // Predicated region
        $region61: #{tpu_custom_call.1} parent=55 // pred_check
          %p468 = pneg %p84
        $region62: #{tpu_custom_call.1} parent=55 // pred_check_branch
          %470 = sbr.rel (%p468) target = $region64
        $region63: #{tpu_custom_call.1} parent=55 // pred_region
          %471 = dma.done %s464, 4096
        $region64: #{tpu_custom_call.1} parent=55 // pred_fallthru
          _
        %s472 = sand.u32 %s37, 1
        %s473 = scalar_lea.sflag [#allocation6], %s472
        %s474 = sand.u32 %s97, 1
        %s475 = smul.addr %s474, 256
        %s476 = scalar_lea.vmem [#allocation7], %s475
        // Predicated region
        $region65: #{tpu_custom_call.1} parent=55 // pred_check
          %p477 = pneg %p110
        $region66: #{tpu_custom_call.1} parent=55 // pred_check_branch
          %479 = sbr.rel (%p477) target = $region68
        $region67: #{tpu_custom_call.1} parent=55 // pred_region
          %480 = dma.done %s473, 4096
        $region68: #{tpu_custom_call.1} parent=55 // pred_fallthru
          _
        // Predicated region
        $region69: #{tpu_custom_call.1} parent=55 // pred_check
          %p481 = pneg %p131
        $region70: #{tpu_custom_call.1} parent=55 // pred_check_branch
          %483 = sbr.rel (%p481) target = $region72
        $region71: #{tpu_custom_call.1} parent=55 // pred_region
          %484 = dma.done [#allocation9], 4096
        $region72: #{tpu_custom_call.1} parent=55 // pred_fallthru
          _
        // Predicated region
        $region73: #{tpu_custom_call.1} parent=55 // pred_check
          %p485 = pneg %p173
        $region74: #{tpu_custom_call.1} parent=55 // pred_check_branch
          %487 = sbr.rel (%p485) target = $region76
        $region75: #{tpu_custom_call.1} parent=55 // pred_region
          %488 = dma.done [#allocation9], 4096
        $region76: #{tpu_custom_call.1} parent=55 // pred_fallthru
          _
        // Predicated region
        $region77: #{tpu_custom_call.1} parent=55 // pred_check
          %p489 = pneg %p215
        $region78: #{tpu_custom_call.1} parent=55 // pred_check_branch
          %491 = sbr.rel (%p489) target = $region80
        $region79: #{tpu_custom_call.1} parent=55 // pred_region
          %492 = dma.done [#allocation12], 4096
        $region80: #{tpu_custom_call.1} parent=55 // pred_fallthru
          _
        %s493 = sand.u32 %s45, 1
        %s494 = scalar_lea.sflag [#allocation3], %s493
        %s495 = sand.u32 %s45, 1
        %s496 = smul.addr %s495, 256
        %s497 = scalar_lea.vmem [#allocation2], %s496
        %p498 = pneg %p58
        %p499 = pneg %p55
        %s500 = sand.u32 %s37, 1
        %s501 = scalar_lea.sflag [#allocation6], %s500
        %s502 = sand.u32 %s71, 1
        %s503 = smul.addr %s502, 256
        %s504 = scalar_lea.vmem [#allocation5], %s503
        %p505 = pneg %p84
        %p506 = pneg %p81
        %s507 = sand.u32 %s37, 1
        %s508 = scalar_lea.sflag [#allocation6], %s507
        %s509 = sand.u32 %s97, 1
        %s510 = smul.addr %s509, 256
        %s511 = scalar_lea.vmem [#allocation7], %s510
        %p512 = pneg %p110
        %p513 = pneg %p107
        %p514 = pneg %p131
        %p515 = pneg %p128
        %p516 = pneg %p152
        %p517 = pneg %p149
        %p518 = pneg %p173
        %p519 = pneg %p170
        %p520 = pneg %p194
        %p521 = pneg %p191
        %p522 = pneg %p215
        %p523 = pneg %p212
        %p524 = pneg %p236
        %p525 = pneg %p233
        %p526 = pneg %p262
        %p527 = pneg %p259
        %s528 = sand.u32 %s249, 1
        %s529 = scalar_lea.sflag [#allocation4], %s528
        %s530 = sand.u32 %s249, 1
        %s531 = smul.addr %s530, 256
        %s532 = scalar_lea.vmem [#allocation13], %s531
        %p533 = pneg %p288
        %p534 = pneg %p285
        %s535 = sand.u32 %s37, 1
        %s536 = scalar_lea.sflag [#allocation15], %s535
        %s537 = sand.u32 %s275, 1
        %s538 = smul.addr %s537, 256
        %s539 = scalar_lea.vmem [#allocation14], %s538
        %p540 = pneg %p314
        %p541 = pneg %p311
        %s542 = sand.u32 %s37, 1
        %s543 = scalar_lea.sflag [#allocation15], %s542
        %s544 = sand.u32 %s301, 1
        %s545 = smul.addr %s544, 256
        %s546 = scalar_lea.vmem [#allocation16], %s545
        %s547 = smul.u32 32, %s37
        %s548 = smul.u32 32, %s37
        %s549 = smul.u32 32, %s37
        %s550 = smul.u32 32, %s37
        %s551 = smul.u32 32, %s37
        %s552 = smul.u32 32, %s37
        %v553 = vld [vmem:[%s458] sm:$0xff]
        %v554 = vld [vmem:[%s458 + $0x8] sm:$0xff]
        %v555 = vld [vmem:[%s458 + $0x10] sm:$0xff]
        %v556 = vld [vmem:[%s458 + $0x18] sm:$0xff]
        %v557 = vld [vmem:[%s458 + $0x20] sm:$0xff]
        %v558 = vld [vmem:[%s458 + $0x28] sm:$0xff]
        %v559 = vld [vmem:[%s458 + $0x30] sm:$0xff]
        %v560 = vld [vmem:[%s458 + $0x38] sm:$0xff]
        %v561 = vld [vmem:[%s458 + $0x40] sm:$0xff]
        %v562 = vld [vmem:[%s458 + $0x48] sm:$0xff]
        %v563 = vld [vmem:[%s458 + $0x50] sm:$0xff]
        %v564 = vld [vmem:[%s458 + $0x58] sm:$0xff]
        %v565 = vld [vmem:[%s458 + $0x60] sm:$0xff]
        %v566 = vld [vmem:[%s458 + $0x68] sm:$0xff]
        %v567 = vld [vmem:[%s458 + $0x70] sm:$0xff]
        %v568 = vld [vmem:[%s458 + $0x78] sm:$0xff]
        %v569 = vld [vmem:[%s458 + $0x80] sm:$0xff]
        %v570 = vld [vmem:[%s458 + $0x88] sm:$0xff]
        %v571 = vld [vmem:[%s458 + $0x90] sm:$0xff]
        %v572 = vld [vmem:[%s458 + $0x98] sm:$0xff]
        %v573 = vld [vmem:[%s458 + $0xa0] sm:$0xff]
        %v574 = vld [vmem:[%s458 + $0xa8] sm:$0xff]
        %v575 = vld [vmem:[%s458 + $0xb0] sm:$0xff]
        %v576 = vld [vmem:[%s458 + $0xb8] sm:$0xff]
        %v577 = vld [vmem:[%s458 + $0xc0] sm:$0xff]
        %v578 = vld [vmem:[%s458 + $0xc8] sm:$0xff]
        %v579 = vld [vmem:[%s458 + $0xd0] sm:$0xff]
        %v580 = vld [vmem:[%s458 + $0xd8] sm:$0xff]
        %v581 = vld [vmem:[%s458 + $0xe0] sm:$0xff]
        %v582 = vld [vmem:[%s458 + $0xe8] sm:$0xff]
        %v583 = vld [vmem:[%s458 + $0xf0] sm:$0xff]
        %v584 = vld [vmem:[%s458 + $0xf8] sm:$0xff]
        %v585 = vld [vmem:[#allocation8] sm:$0xff]
        %v586 = vld [vmem:[#allocation8 + $0x8] sm:$0xff]
        %v587 = vld [vmem:[#allocation8 + $0x10] sm:$0xff]
        %v588 = vld [vmem:[#allocation8 + $0x18] sm:$0xff]
        %v589 = vld [vmem:[#allocation8 + $0x20] sm:$0xff]
        %v590 = vld [vmem:[#allocation8 + $0x28] sm:$0xff]
        %v591 = vld [vmem:[#allocation8 + $0x30] sm:$0xff]
        %v592 = vld [vmem:[#allocation8 + $0x38] sm:$0xff]
        %v593 = vld [vmem:[#allocation8 + $0x40] sm:$0xff]
        %v594 = vld [vmem:[#allocation8 + $0x48] sm:$0xff]
        %v595 = vld [vmem:[#allocation8 + $0x50] sm:$0xff]
        %v596 = vld [vmem:[#allocation8 + $0x58] sm:$0xff]
        %v597 = vld [vmem:[#allocation8 + $0x60] sm:$0xff]
        %v598 = vld [vmem:[#allocation8 + $0x68] sm:$0xff]
        %v599 = vld [vmem:[#allocation8 + $0x70] sm:$0xff]
        %v600 = vld [vmem:[#allocation8 + $0x78] sm:$0xff]
        %v601 = vld [vmem:[#allocation8 + $0x80] sm:$0xff]
        %v602 = vld [vmem:[#allocation8 + $0x88] sm:$0xff]
        %v603 = vld [vmem:[#allocation8 + $0x90] sm:$0xff]
        %v604 = vld [vmem:[#allocation8 + $0x98] sm:$0xff]
        %v605 = vld [vmem:[#allocation8 + $0xa0] sm:$0xff]
        %v606 = vld [vmem:[#allocation8 + $0xa8] sm:$0xff]
        %v607 = vld [vmem:[#allocation8 + $0xb0] sm:$0xff]
        %v608 = vld [vmem:[#allocation8 + $0xb8] sm:$0xff]
        %v609 = vld [vmem:[#allocation8 + $0xc0] sm:$0xff]
        %v610 = vld [vmem:[#allocation8 + $0xc8] sm:$0xff]
        %v611 = vld [vmem:[#allocation8 + $0xd0] sm:$0xff]
        %v612 = vld [vmem:[#allocation8 + $0xd8] sm:$0xff]
        %v613 = vld [vmem:[#allocation8 + $0xe0] sm:$0xff]
        %v614 = vld [vmem:[#allocation8 + $0xe8] sm:$0xff]
        %v615 = vld [vmem:[#allocation8 + $0xf0] sm:$0xff]
        %v616 = vld [vmem:[#allocation8 + $0xf8] sm:$0xff]
        %v617 = vld [vmem:[%s4] sm:$0x3]
        %v619 = vlaneseq
        %v620 = vshrl.u32 %v619, 7
        %v621 = vsub.s32 0, %v620
        %v622 = vrot.slane %v617, %v621
        %v623 = vlaneseq
        %v624 = vshrl.u32 %v623, 7
        %v625 = vsub.s32 1, %v624
        %v626 = vrot.slane %v617, %v625
        %v661 = vunpack.c.l.b16 %v553
        %v662 = vunpack.c.h.b16 %v553
        %v663 = vunpack.c.l.b16 %v554
        %v664 = vunpack.c.h.b16 %v554
        %v665 = vunpack.c.l.b16 %v555
        %v666 = vunpack.c.h.b16 %v555
        %v667 = vunpack.c.l.b16 %v556
        %v668 = vunpack.c.h.b16 %v556
        %v669 = vunpack.c.l.b16 %v557
        %v670 = vunpack.c.h.b16 %v557
        %v671 = vunpack.c.l.b16 %v558
        %v672 = vunpack.c.h.b16 %v558
        %v673 = vunpack.c.l.b16 %v559
        %v674 = vunpack.c.h.b16 %v559
        %v675 = vunpack.c.l.b16 %v560
        %v676 = vunpack.c.h.b16 %v560
        %v677 = vunpack.c.l.b16 %v561
        %v678 = vunpack.c.h.b16 %v561
        %v679 = vunpack.c.l.b16 %v562
        %v680 = vunpack.c.h.b16 %v562
        %v681 = vunpack.c.l.b16 %v563
        %v682 = vunpack.c.h.b16 %v563
        %v683 = vunpack.c.l.b16 %v564
        %v684 = vunpack.c.h.b16 %v564
        %v685 = vunpack.c.l.b16 %v565
        %v686 = vunpack.c.h.b16 %v565
        %v687 = vunpack.c.l.b16 %v566
        %v688 = vunpack.c.h.b16 %v566
        %v689 = vunpack.c.l.b16 %v567
        %v690 = vunpack.c.h.b16 %v567
        %v691 = vunpack.c.l.b16 %v568
        %v692 = vunpack.c.h.b16 %v568
        %v693 = vunpack.c.l.b16 %v569
        %v694 = vunpack.c.h.b16 %v569
        %v695 = vunpack.c.l.b16 %v570
        %v696 = vunpack.c.h.b16 %v570
        %v697 = vunpack.c.l.b16 %v571
        %v698 = vunpack.c.h.b16 %v571
        %v699 = vunpack.c.l.b16 %v572
        %v700 = vunpack.c.h.b16 %v572
        %v701 = vunpack.c.l.b16 %v573
        %v702 = vunpack.c.h.b16 %v573
        %v703 = vunpack.c.l.b16 %v574
        %v704 = vunpack.c.h.b16 %v574
        %v705 = vunpack.c.l.b16 %v575
        %v706 = vunpack.c.h.b16 %v575
        %v707 = vunpack.c.l.b16 %v576
        %v708 = vunpack.c.h.b16 %v576
        %v709 = vunpack.c.l.b16 %v577
        %v710 = vunpack.c.h.b16 %v577
        %v711 = vunpack.c.l.b16 %v578
        %v712 = vunpack.c.h.b16 %v578
        %v713 = vunpack.c.l.b16 %v579
        %v714 = vunpack.c.h.b16 %v579
        %v715 = vunpack.c.l.b16 %v580
        %v716 = vunpack.c.h.b16 %v580
        %v717 = vunpack.c.l.b16 %v581
        %v718 = vunpack.c.h.b16 %v581
        %v719 = vunpack.c.l.b16 %v582
        %v720 = vunpack.c.h.b16 %v582
        %v721 = vunpack.c.l.b16 %v583
        %v722 = vunpack.c.h.b16 %v583
        %v723 = vunpack.c.l.b16 %v584
        %v724 = vunpack.c.h.b16 %v584
        %v725 = vpack.c.b16 %v663, %v661
        %v726 = vpack.c.b16 %v664, %v662
        %v727 = vpack.c.b16 %v667, %v665
        %v728 = vpack.c.b16 %v668, %v666
        %v729 = vpack.c.b16 %v671, %v669
        %v730 = vpack.c.b16 %v672, %v670
        %v731 = vpack.c.b16 %v675, %v673
        %v732 = vpack.c.b16 %v676, %v674
        %v733 = vpack.c.b16 %v679, %v677
        %v734 = vpack.c.b16 %v680, %v678
        %v735 = vpack.c.b16 %v683, %v681
        %v736 = vpack.c.b16 %v684, %v682
        %v737 = vpack.c.b16 %v687, %v685
        %v738 = vpack.c.b16 %v688, %v686
        %v739 = vpack.c.b16 %v691, %v689
        %v740 = vpack.c.b16 %v692, %v690
        %v741 = vpack.c.b16 %v695, %v693
        %v742 = vpack.c.b16 %v696, %v694
        %v743 = vpack.c.b16 %v699, %v697
        %v744 = vpack.c.b16 %v700, %v698
        %v745 = vpack.c.b16 %v703, %v701
        %v746 = vpack.c.b16 %v704, %v702
        %v747 = vpack.c.b16 %v707, %v705
        %v748 = vpack.c.b16 %v708, %v706
        %v749 = vpack.c.b16 %v711, %v709
        %v750 = vpack.c.b16 %v712, %v710
        %v751 = vpack.c.b16 %v715, %v713
        %v752 = vpack.c.b16 %v716, %v714
        %v753 = vpack.c.b16 %v719, %v717
        %v754 = vpack.c.b16 %v720, %v718
        %v755 = vpack.c.b16 %v723, %v721
        %v756 = vpack.c.b16 %v724, %v722
        %v821 = vunpack.c.l.b16 %v585
        %v822 = vunpack.c.h.b16 %v585
        %v823 = vunpack.c.l.b16 %v586
        %v824 = vunpack.c.h.b16 %v586
        %v825 = vunpack.c.l.b16 %v587
        %v826 = vunpack.c.h.b16 %v587
        %v827 = vunpack.c.l.b16 %v588
        %v828 = vunpack.c.h.b16 %v588
        %v829 = vunpack.c.l.b16 %v589
        %v830 = vunpack.c.h.b16 %v589
        %v831 = vunpack.c.l.b16 %v590
        %v832 = vunpack.c.h.b16 %v590
        %v833 = vunpack.c.l.b16 %v591
        %v834 = vunpack.c.h.b16 %v591
        %v835 = vunpack.c.l.b16 %v592
        %v836 = vunpack.c.h.b16 %v592
        %v837 = vunpack.c.l.b16 %v593
        %v838 = vunpack.c.h.b16 %v593
        %v839 = vunpack.c.l.b16 %v594
        %v840 = vunpack.c.h.b16 %v594
        %v841 = vunpack.c.l.b16 %v595
        %v842 = vunpack.c.h.b16 %v595
        %v843 = vunpack.c.l.b16 %v596
        %v844 = vunpack.c.h.b16 %v596
        %v845 = vunpack.c.l.b16 %v597
        %v846 = vunpack.c.h.b16 %v597
        %v847 = vunpack.c.l.b16 %v598
        %v848 = vunpack.c.h.b16 %v598
        %v849 = vunpack.c.l.b16 %v599
        %v850 = vunpack.c.h.b16 %v599
        %v851 = vunpack.c.l.b16 %v600
        %v852 = vunpack.c.h.b16 %v600
        %v853 = vunpack.c.l.b16 %v601
        %v854 = vunpack.c.h.b16 %v601
        %v855 = vunpack.c.l.b16 %v602
        %v856 = vunpack.c.h.b16 %v602
        %v857 = vunpack.c.l.b16 %v603
        %v858 = vunpack.c.h.b16 %v603
        %v859 = vunpack.c.l.b16 %v604
        %v860 = vunpack.c.h.b16 %v604
        %v861 = vunpack.c.l.b16 %v605
        %v862 = vunpack.c.h.b16 %v605
        %v863 = vunpack.c.l.b16 %v606
        %v864 = vunpack.c.h.b16 %v606
        %v865 = vunpack.c.l.b16 %v607
        %v866 = vunpack.c.h.b16 %v607
        %v867 = vunpack.c.l.b16 %v608
        %v868 = vunpack.c.h.b16 %v608
        %v869 = vunpack.c.l.b16 %v609
        %v870 = vunpack.c.h.b16 %v609
        %v871 = vunpack.c.l.b16 %v610
        %v872 = vunpack.c.h.b16 %v610
        %v873 = vunpack.c.l.b16 %v611
        %v874 = vunpack.c.h.b16 %v611
        %v875 = vunpack.c.l.b16 %v612
        %v876 = vunpack.c.h.b16 %v612
        %v877 = vunpack.c.l.b16 %v613
        %v878 = vunpack.c.h.b16 %v613
        %v879 = vunpack.c.l.b16 %v614
        %v880 = vunpack.c.h.b16 %v614
        %v881 = vunpack.c.l.b16 %v615
        %v882 = vunpack.c.h.b16 %v615
        %v883 = vunpack.c.l.b16 %v616
        %v884 = vunpack.c.h.b16 %v616
        %v885 = vpack.c.b16 %v823, %v821
        %v886 = vpack.c.b16 %v824, %v822
        %v887 = vpack.c.b16 %v827, %v825
        %v888 = vpack.c.b16 %v828, %v826
        %v889 = vpack.c.b16 %v831, %v829
        %v890 = vpack.c.b16 %v832, %v830
        %v891 = vpack.c.b16 %v835, %v833
        %v892 = vpack.c.b16 %v836, %v834
        %v893 = vpack.c.b16 %v839, %v837
        %v894 = vpack.c.b16 %v840, %v838
        %v895 = vpack.c.b16 %v843, %v841
        %v896 = vpack.c.b16 %v844, %v842
        %v897 = vpack.c.b16 %v847, %v845
        %v898 = vpack.c.b16 %v848, %v846
        %v899 = vpack.c.b16 %v851, %v849
        %v900 = vpack.c.b16 %v852, %v850
        %v901 = vpack.c.b16 %v855, %v853
        %v902 = vpack.c.b16 %v856, %v854
        %v903 = vpack.c.b16 %v859, %v857
        %v904 = vpack.c.b16 %v860, %v858
        %v905 = vpack.c.b16 %v863, %v861
        %v906 = vpack.c.b16 %v864, %v862
        %v907 = vpack.c.b16 %v867, %v865
        %v908 = vpack.c.b16 %v868, %v866
        %v909 = vpack.c.b16 %v871, %v869
        %v910 = vpack.c.b16 %v872, %v870
        %v911 = vpack.c.b16 %v875, %v873
        %v912 = vpack.c.b16 %v876, %v874
        %v913 = vpack.c.b16 %v879, %v877
        %v914 = vpack.c.b16 %v880, %v878
        %v915 = vpack.c.b16 %v883, %v881
        %v916 = vpack.c.b16 %v884, %v882
        %949 = vmatprep.subr.bf16.mxu0 %v886
        %950 = vmatpush1.bf16.msra.mxu0 %v885
        %951 = vmatprep.subr.bf16.mxu0 %v888
        %952 = vmatpush1.bf16.msra.mxu0 %v887
        %953 = vmatprep.subr.bf16.mxu0 %v890
        %954 = vmatpush1.bf16.msra.mxu0 %v889
        %955 = vmatprep.subr.bf16.mxu0 %v892
        %956 = vmatpush1.bf16.msra.mxu0 %v891
        %957 = vmatprep.subr.bf16.mxu0 %v894
        %958 = vmatpush1.bf16.msra.mxu0 %v893
        %959 = vmatprep.subr.bf16.mxu0 %v896
        %960 = vmatpush1.bf16.msra.mxu0 %v895
        %961 = vmatprep.subr.bf16.mxu0 %v898
        %962 = vmatpush1.bf16.msra.mxu0 %v897
        %963 = vmatprep.subr.bf16.mxu0 %v900
        %964 = vmatpush1.bf16.msra.mxu0 %v899
        %965 = vmatprep.subr.bf16.mxu0 %v902
        %966 = vmatpush1.bf16.msra.mxu0 %v901
        %967 = vmatprep.subr.bf16.mxu0 %v904
        %968 = vmatpush1.bf16.msra.mxu0 %v903
        %969 = vmatprep.subr.bf16.mxu0 %v906
        %970 = vmatpush1.bf16.msra.mxu0 %v905
        %971 = vmatprep.subr.bf16.mxu0 %v908
        %972 = vmatpush1.bf16.msra.mxu0 %v907
        %973 = vmatprep.subr.bf16.mxu0 %v910
        %974 = vmatpush1.bf16.msra.mxu0 %v909
        %975 = vmatprep.subr.bf16.mxu0 %v912
        %976 = vmatpush1.bf16.msra.mxu0 %v911
        %977 = vmatprep.subr.bf16.mxu0 %v914
        %978 = vmatpush1.bf16.msra.mxu0 %v913
        %979 = vmatprep.subr.bf16.mxu0 %v916
        %980 = vmatpush1.bf16.msra.mxu0 %v915
        %981 = vmatprep.mubr.bf16.mxu0 %v726
        %982 = vmatmul.mubr.bf16.gmra.mrb[0].mxu0 %v725
        %v983 = vpop.f32.mrb[0].mxu0
        %v984 = vadd.f32 %v622, %v983
        %v985 = vpop.f32.mrb[0].mxu0
        %v986 = vadd.f32 %v626, %v985
        %v987 = vpop.f32.mrb[0].mxu0
        %v988 = vadd.f32 %v622, %v987
        %v989 = vpop.f32.mrb[0].mxu0
        %v990 = vadd.f32 %v626, %v989
        %991 = vmatprep.mubr.bf16.mxu0 %v728
        %992 = vmatmul.mubr.bf16.gmra.mrb[0].mxu0 %v727
        %v993 = vpop.f32.mrb[0].mxu0
        %v994 = vadd.f32 %v622, %v993
        %v995 = vpop.f32.mrb[0].mxu0
        %v996 = vadd.f32 %v626, %v995
        %v997 = vpop.f32.mrb[0].mxu0
        %v998 = vadd.f32 %v622, %v997
        %v999 = vpop.f32.mrb[0].mxu0
        %v1000 = vadd.f32 %v626, %v999
        %1001 = vmatprep.mubr.bf16.mxu0 %v730
        %1002 = vmatmul.mubr.bf16.gmra.mrb[0].mxu0 %v729
        %v1003 = vpop.f32.mrb[0].mxu0
        %v1004 = vadd.f32 %v622, %v1003
        %v1005 = vpop.f32.mrb[0].mxu0
        %v1006 = vadd.f32 %v626, %v1005
        %v1007 = vpop.f32.mrb[0].mxu0
        %v1008 = vadd.f32 %v622, %v1007
        %v1009 = vpop.f32.mrb[0].mxu0
        %v1010 = vadd.f32 %v626, %v1009
        %1011 = vmatprep.mubr.bf16.mxu0 %v732
        %1012 = vmatmul.mubr.bf16.gmra.mrb[0].mxu0 %v731
        %v1013 = vpop.f32.mrb[0].mxu0
        %v1014 = vadd.f32 %v622, %v1013
        %v1015 = vpop.f32.mrb[0].mxu0
        %v1016 = vadd.f32 %v626, %v1015
        %v1017 = vpop.f32.mrb[0].mxu0
        %v1018 = vadd.f32 %v622, %v1017
        %v1019 = vpop.f32.mrb[0].mxu0
        %v1020 = vadd.f32 %v626, %v1019
        %1021 = vmatprep.mubr.bf16.mxu0 %v734
        %1022 = vmatmul.mubr.bf16.gmra.mrb[0].mxu0 %v733
        %v1023 = vpop.f32.mrb[0].mxu0
        %v1024 = vadd.f32 %v622, %v1023
        %v1025 = vpop.f32.mrb[0].mxu0
        %v1026 = vadd.f32 %v626, %v1025
        %v1027 = vpop.f32.mrb[0].mxu0
        %v1028 = vadd.f32 %v622, %v1027
        %v1029 = vpop.f32.mrb[0].mxu0
        %v1030 = vadd.f32 %v626, %v1029
        %1031 = vmatprep.mubr.bf16.mxu0 %v736
        %1032 = vmatmul.mubr.bf16.gmra.mrb[0].mxu0 %v735
        %v1033 = vpop.f32.mrb[0].mxu0
        %v1034 = vadd.f32 %v622, %v1033
        %v1035 = vpop.f32.mrb[0].mxu0
        %v1036 = vadd.f32 %v626, %v1035
        %v1037 = vpop.f32.mrb[0].mxu0
        %v1038 = vadd.f32 %v622, %v1037
        %v1039 = vpop.f32.mrb[0].mxu0
        %v1040 = vadd.f32 %v626, %v1039
        %1041 = vmatprep.mubr.bf16.mxu0 %v738
        %1042 = vmatmul.mubr.bf16.gmra.mrb[0].mxu0 %v737
        %v1043 = vpop.f32.mrb[0].mxu0
        %v1044 = vadd.f32 %v622, %v1043
        %v1045 = vpop.f32.mrb[0].mxu0
        %v1046 = vadd.f32 %v626, %v1045
        %v1047 = vpop.f32.mrb[0].mxu0
        %v1048 = vadd.f32 %v622, %v1047
        %v1049 = vpop.f32.mrb[0].mxu0
        %v1050 = vadd.f32 %v626, %v1049
        %1051 = vmatprep.mubr.bf16.mxu0 %v740
        %1052 = vmatmul.mubr.bf16.gmra.mrb[0].mxu0 %v739
        %v1053 = vpop.f32.mrb[0].mxu0
        %v1054 = vadd.f32 %v622, %v1053
        %v1055 = vpop.f32.mrb[0].mxu0
        %v1056 = vadd.f32 %v626, %v1055
        %v1057 = vpop.f32.mrb[0].mxu0
        %v1058 = vadd.f32 %v622, %v1057
        %v1059 = vpop.f32.mrb[0].mxu0
        %v1060 = vadd.f32 %v626, %v1059
        %1061 = vmatprep.mubr.bf16.mxu0 %v742
        %1062 = vmatmul.mubr.bf16.gmra.mrb[0].mxu0 %v741
        %v1063 = vpop.f32.mrb[0].mxu0
        %v1064 = vadd.f32 %v622, %v1063
        %v1065 = vpop.f32.mrb[0].mxu0
        %v1066 = vadd.f32 %v626, %v1065
        %v1067 = vpop.f32.mrb[0].mxu0
        %v1068 = vadd.f32 %v622, %v1067
        %v1069 = vpop.f32.mrb[0].mxu0
        %v1070 = vadd.f32 %v626, %v1069
        %1071 = vmatprep.mubr.bf16.mxu0 %v744
        %1072 = vmatmul.mubr.bf16.gmra.mrb[0].mxu0 %v743
        %v1073 = vpop.f32.mrb[0].mxu0
        %v1074 = vadd.f32 %v622, %v1073
        %v1075 = vpop.f32.mrb[0].mxu0
        %v1076 = vadd.f32 %v626, %v1075
        %v1077 = vpop.f32.mrb[0].mxu0
        %v1078 = vadd.f32 %v622, %v1077
        %v1079 = vpop.f32.mrb[0].mxu0
        %v1080 = vadd.f32 %v626, %v1079
        %1081 = vmatprep.mubr.bf16.mxu0 %v746
        %1082 = vmatmul.mubr.bf16.gmra.mrb[0].mxu0 %v745
        %v1083 = vpop.f32.mrb[0].mxu0
        %v1084 = vadd.f32 %v622, %v1083
        %v1085 = vpop.f32.mrb[0].mxu0
        %v1086 = vadd.f32 %v626, %v1085
        %v1087 = vpop.f32.mrb[0].mxu0
        %v1088 = vadd.f32 %v622, %v1087
        %v1089 = vpop.f32.mrb[0].mxu0
        %v1090 = vadd.f32 %v626, %v1089
        %1091 = vmatprep.mubr.bf16.mxu0 %v748
        %1092 = vmatmul.mubr.bf16.gmra.mrb[0].mxu0 %v747
        %v1093 = vpop.f32.mrb[0].mxu0
        %v1094 = vadd.f32 %v622, %v1093
        %v1095 = vpop.f32.mrb[0].mxu0
        %v1096 = vadd.f32 %v626, %v1095
        %v1097 = vpop.f32.mrb[0].mxu0
        %v1098 = vadd.f32 %v622, %v1097
        %v1099 = vpop.f32.mrb[0].mxu0
        %v1100 = vadd.f32 %v626, %v1099
        %1101 = vmatprep.mubr.bf16.mxu0 %v750
        %1102 = vmatmul.mubr.bf16.gmra.mrb[0].mxu0 %v749
        %v1103 = vpop.f32.mrb[0].mxu0
        %v1104 = vadd.f32 %v622, %v1103
        %v1105 = vpop.f32.mrb[0].mxu0
        %v1106 = vadd.f32 %v626, %v1105
        %v1107 = vpop.f32.mrb[0].mxu0
        %v1108 = vadd.f32 %v622, %v1107
        %v1109 = vpop.f32.mrb[0].mxu0
        %v1110 = vadd.f32 %v626, %v1109
        %1111 = vmatprep.mubr.bf16.mxu0 %v752
        %1112 = vmatmul.mubr.bf16.gmra.mrb[0].mxu0 %v751
        %v1113 = vpop.f32.mrb[0].mxu0
        %v1114 = vadd.f32 %v622, %v1113
        %v1115 = vpop.f32.mrb[0].mxu0
        %v1116 = vadd.f32 %v626, %v1115
        %v1117 = vpop.f32.mrb[0].mxu0
        %v1118 = vadd.f32 %v622, %v1117
        %v1119 = vpop.f32.mrb[0].mxu0
        %v1120 = vadd.f32 %v626, %v1119
        %1121 = vmatprep.mubr.bf16.mxu0 %v754
        %1122 = vmatmul.mubr.bf16.gmra.mrb[0].mxu0 %v753
        %v1123 = vpop.f32.mrb[0].mxu0
        %v1124 = vadd.f32 %v622, %v1123
        %v1125 = vpop.f32.mrb[0].mxu0
        %v1126 = vadd.f32 %v626, %v1125
        %v1127 = vpop.f32.mrb[0].mxu0
        %v1128 = vadd.f32 %v622, %v1127
        %v1129 = vpop.f32.mrb[0].mxu0
        %v1130 = vadd.f32 %v626, %v1129
        %1131 = vmatprep.mubr.bf16.mxu0 %v756
        %1132 = vmatmul.mubr.bf16.gmra.mrb[0].mxu0 %v755
        %v1133 = vpop.f32.mrb[0].mxu0
        %v1134 = vadd.f32 %v622, %v1133
        %v1135 = vpop.f32.mrb[0].mxu0
        %v1136 = vadd.f32 %v626, %v1135
        %v1137 = vpop.f32.mrb[0].mxu0
        %v1138 = vadd.f32 %v622, %v1137
        %v1139 = vpop.f32.mrb[0].mxu0
        %v1140 = vadd.f32 %v626, %v1139
        %1141 = vdwg.mxu0
        %v1142 = vpack.c.bf16 %v988, %v984
        %v1143 = vpack.c.bf16 %v990, %v986
        %v1144 = vpack.c.bf16 %v998, %v994
        %v1145 = vpack.c.bf16 %v1000, %v996
        %v1146 = vpack.c.bf16 %v1008, %v1004
        %v1147 = vpack.c.bf16 %v1010, %v1006
        %v1148 = vpack.c.bf16 %v1018, %v1014
        %v1149 = vpack.c.bf16 %v1020, %v1016
        %v1150 = vpack.c.bf16 %v1028, %v1024
        %v1151 = vpack.c.bf16 %v1030, %v1026
        %v1152 = vpack.c.bf16 %v1038, %v1034
        %v1153 = vpack.c.bf16 %v1040, %v1036
        %v1154 = vpack.c.bf16 %v1048, %v1044
        %v1155 = vpack.c.bf16 %v1050, %v1046
        %v1156 = vpack.c.bf16 %v1058, %v1054
        %v1157 = vpack.c.bf16 %v1060, %v1056
        %v1158 = vpack.c.bf16 %v1068, %v1064
        %v1159 = vpack.c.bf16 %v1070, %v1066
        %v1160 = vpack.c.bf16 %v1078, %v1074
        %v1161 = vpack.c.bf16 %v1080, %v1076
        %v1162 = vpack.c.bf16 %v1088, %v1084
        %v1163 = vpack.c.bf16 %v1090, %v1086
        %v1164 = vpack.c.bf16 %v1098, %v1094
        %v1165 = vpack.c.bf16 %v1100, %v1096
        %v1166 = vpack.c.bf16 %v1108, %v1104
        %v1167 = vpack.c.bf16 %v1110, %v1106
        %v1168 = vpack.c.bf16 %v1118, %v1114
        %v1169 = vpack.c.bf16 %v1120, %v1116
        %v1170 = vpack.c.bf16 %v1128, %v1124
        %v1171 = vpack.c.bf16 %v1130, %v1126
        %v1172 = vpack.c.bf16 %v1138, %v1134
        %v1173 = vpack.c.bf16 %v1140, %v1136
        %v1206 = vunpack.c.l.b16 %v1142
        %v1207 = vunpack.c.l.b16 %v1143
        %v1208 = vunpack.c.h.b16 %v1142
        %v1209 = vunpack.c.h.b16 %v1143
        %v1210 = vunpack.c.l.b16 %v1144
        %v1211 = vunpack.c.l.b16 %v1145
        %v1212 = vunpack.c.h.b16 %v1144
        %v1213 = vunpack.c.h.b16 %v1145
        %v1214 = vunpack.c.l.b16 %v1146
        %v1215 = vunpack.c.l.b16 %v1147
        %v1216 = vunpack.c.h.b16 %v1146
        %v1217 = vunpack.c.h.b16 %v1147
        %v1218 = vunpack.c.l.b16 %v1148
        %v1219 = vunpack.c.l.b16 %v1149
        %v1220 = vunpack.c.h.b16 %v1148
        %v1221 = vunpack.c.h.b16 %v1149
        %v1222 = vunpack.c.l.b16 %v1150
        %v1223 = vunpack.c.l.b16 %v1151
        %v1224 = vunpack.c.h.b16 %v1150
        %v1225 = vunpack.c.h.b16 %v1151
        %v1226 = vunpack.c.l.b16 %v1152
        %v1227 = vunpack.c.l.b16 %v1153
        %v1228 = vunpack.c.h.b16 %v1152
        %v1229 = vunpack.c.h.b16 %v1153
        %v1230 = vunpack.c.l.b16 %v1154
        %v1231 = vunpack.c.l.b16 %v1155
        %v1232 = vunpack.c.h.b16 %v1154
        %v1233 = vunpack.c.h.b16 %v1155
        %v1234 = vunpack.c.l.b16 %v1156
        %v1235 = vunpack.c.l.b16 %v1157
        %v1236 = vunpack.c.h.b16 %v1156
        %v1237 = vunpack.c.h.b16 %v1157
        %v1238 = vunpack.c.l.b16 %v1158
        %v1239 = vunpack.c.l.b16 %v1159
        %v1240 = vunpack.c.h.b16 %v1158
        %v1241 = vunpack.c.h.b16 %v1159
        %v1242 = vunpack.c.l.b16 %v1160
        %v1243 = vunpack.c.l.b16 %v1161
        %v1244 = vunpack.c.h.b16 %v1160
        %v1245 = vunpack.c.h.b16 %v1161
        %v1246 = vunpack.c.l.b16 %v1162
        %v1247 = vunpack.c.l.b16 %v1163
        %v1248 = vunpack.c.h.b16 %v1162
        %v1249 = vunpack.c.h.b16 %v1163
        %v1250 = vunpack.c.l.b16 %v1164
        %v1251 = vunpack.c.l.b16 %v1165
        %v1252 = vunpack.c.h.b16 %v1164
        %v1253 = vunpack.c.h.b16 %v1165
        %v1254 = vunpack.c.l.b16 %v1166
        %v1255 = vunpack.c.l.b16 %v1167
        %v1256 = vunpack.c.h.b16 %v1166
        %v1257 = vunpack.c.h.b16 %v1167
        %v1258 = vunpack.c.l.b16 %v1168
        %v1259 = vunpack.c.l.b16 %v1169
        %v1260 = vunpack.c.h.b16 %v1168
        %v1261 = vunpack.c.h.b16 %v1169
        %v1262 = vunpack.c.l.b16 %v1170
        %v1263 = vunpack.c.l.b16 %v1171
        %v1264 = vunpack.c.h.b16 %v1170
        %v1265 = vunpack.c.h.b16 %v1171
        %v1266 = vunpack.c.l.b16 %v1172
        %v1267 = vunpack.c.l.b16 %v1173
        %v1268 = vunpack.c.h.b16 %v1172
        %v1269 = vunpack.c.h.b16 %v1173
        %v1270 = vpack.c.b16 %v1207, %v1206
        %v1271 = vpack.c.b16 %v1209, %v1208
        %v1272 = vpack.c.b16 %v1211, %v1210
        %v1273 = vpack.c.b16 %v1213, %v1212
        %v1274 = vpack.c.b16 %v1215, %v1214
        %v1275 = vpack.c.b16 %v1217, %v1216
        %v1276 = vpack.c.b16 %v1219, %v1218
        %v1277 = vpack.c.b16 %v1221, %v1220
        %v1278 = vpack.c.b16 %v1223, %v1222
        %v1279 = vpack.c.b16 %v1225, %v1224
        %v1280 = vpack.c.b16 %v1227, %v1226
        %v1281 = vpack.c.b16 %v1229, %v1228
        %v1282 = vpack.c.b16 %v1231, %v1230
        %v1283 = vpack.c.b16 %v1233, %v1232
        %v1284 = vpack.c.b16 %v1235, %v1234
        %v1285 = vpack.c.b16 %v1237, %v1236
        %v1286 = vpack.c.b16 %v1239, %v1238
        %v1287 = vpack.c.b16 %v1241, %v1240
        %v1288 = vpack.c.b16 %v1243, %v1242
        %v1289 = vpack.c.b16 %v1245, %v1244
        %v1290 = vpack.c.b16 %v1247, %v1246
        %v1291 = vpack.c.b16 %v1249, %v1248
        %v1292 = vpack.c.b16 %v1251, %v1250
        %v1293 = vpack.c.b16 %v1253, %v1252
        %v1294 = vpack.c.b16 %v1255, %v1254
        %v1295 = vpack.c.b16 %v1257, %v1256
        %v1296 = vpack.c.b16 %v1259, %v1258
        %v1297 = vpack.c.b16 %v1261, %v1260
        %v1298 = vpack.c.b16 %v1263, %v1262
        %v1299 = vpack.c.b16 %v1265, %v1264
        %v1300 = vpack.c.b16 %v1267, %v1266
        %v1301 = vpack.c.b16 %v1269, %v1268
        %1334 = vst [vmem:[%s532] sm:$0xff] %v1270
        %1335 = vst [vmem:[%s532 + $0x8] sm:$0xff] %v1271
        %1336 = vst [vmem:[%s532 + $0x10] sm:$0xff] %v1272
        %1337 = vst [vmem:[%s532 + $0x18] sm:$0xff] %v1273
        %1338 = vst [vmem:[%s532 + $0x20] sm:$0xff] %v1274
        %1339 = vst [vmem:[%s532 + $0x28] sm:$0xff] %v1275
        %1340 = vst [vmem:[%s532 + $0x30] sm:$0xff] %v1276
        %1341 = vst [vmem:[%s532 + $0x38] sm:$0xff] %v1277
        %1342 = vst [vmem:[%s532 + $0x40] sm:$0xff] %v1278
        %1343 = vst [vmem:[%s532 + $0x48] sm:$0xff] %v1279
        %1344 = vst [vmem:[%s532 + $0x50] sm:$0xff] %v1280
        %1345 = vst [vmem:[%s532 + $0x58] sm:$0xff] %v1281
        %1346 = vst [vmem:[%s532 + $0x60] sm:$0xff] %v1282
        %1347 = vst [vmem:[%s532 + $0x68] sm:$0xff] %v1283
        %1348 = vst [vmem:[%s532 + $0x70] sm:$0xff] %v1284
        %1349 = vst [vmem:[%s532 + $0x78] sm:$0xff] %v1285
        %1350 = vst [vmem:[%s532 + $0x80] sm:$0xff] %v1286
        %1351 = vst [vmem:[%s532 + $0x88] sm:$0xff] %v1287
        %1352 = vst [vmem:[%s532 + $0x90] sm:$0xff] %v1288
        %1353 = vst [vmem:[%s532 + $0x98] sm:$0xff] %v1289
        %1354 = vst [vmem:[%s532 + $0xa0] sm:$0xff] %v1290
        %1355 = vst [vmem:[%s532 + $0xa8] sm:$0xff] %v1291
        %1356 = vst [vmem:[%s532 + $0xb0] sm:$0xff] %v1292
        %1357 = vst [vmem:[%s532 + $0xb8] sm:$0xff] %v1293
        %1358 = vst [vmem:[%s532 + $0xc0] sm:$0xff] %v1294
        %1359 = vst [vmem:[%s532 + $0xc8] sm:$0xff] %v1295
        %1360 = vst [vmem:[%s532 + $0xd0] sm:$0xff] %v1296
        %1361 = vst [vmem:[%s532 + $0xd8] sm:$0xff] %v1297
        %1362 = vst [vmem:[%s532 + $0xe0] sm:$0xff] %v1298
        %1363 = vst [vmem:[%s532 + $0xe8] sm:$0xff] %v1299
        %1364 = vst [vmem:[%s532 + $0xf0] sm:$0xff] %v1300
        %1365 = vst [vmem:[%s532 + $0xf8] sm:$0xff] %v1301
        %v1366 = vld [vmem:[%s467] sm:$0xff]
        %v1367 = vld [vmem:[%s467 + $0x8] sm:$0xff]
        %v1368 = vld [vmem:[%s467 + $0x10] sm:$0xff]
        %v1369 = vld [vmem:[%s467 + $0x18] sm:$0xff]
        %v1370 = vld [vmem:[%s467 + $0x20] sm:$0xff]
        %v1371 = vld [vmem:[%s467 + $0x28] sm:$0xff]
        %v1372 = vld [vmem:[%s467 + $0x30] sm:$0xff]
        %v1373 = vld [vmem:[%s467 + $0x38] sm:$0xff]
        %v1374 = vld [vmem:[%s467 + $0x40] sm:$0xff]
        %v1375 = vld [vmem:[%s467 + $0x48] sm:$0xff]
        %v1376 = vld [vmem:[%s467 + $0x50] sm:$0xff]
        %v1377 = vld [vmem:[%s467 + $0x58] sm:$0xff]
        %v1378 = vld [vmem:[%s467 + $0x60] sm:$0xff]
        %v1379 = vld [vmem:[%s467 + $0x68] sm:$0xff]
        %v1380 = vld [vmem:[%s467 + $0x70] sm:$0xff]
        %v1381 = vld [vmem:[%s467 + $0x78] sm:$0xff]
        %v1382 = vld [vmem:[%s467 + $0x80] sm:$0xff]
        %v1383 = vld [vmem:[%s467 + $0x88] sm:$0xff]
        %v1384 = vld [vmem:[%s467 + $0x90] sm:$0xff]
        %v1385 = vld [vmem:[%s467 + $0x98] sm:$0xff]
        %v1386 = vld [vmem:[%s467 + $0xa0] sm:$0xff]
        %v1387 = vld [vmem:[%s467 + $0xa8] sm:$0xff]
        %v1388 = vld [vmem:[%s467 + $0xb0] sm:$0xff]
        %v1389 = vld [vmem:[%s467 + $0xb8] sm:$0xff]
        %v1390 = vld [vmem:[%s467 + $0xc0] sm:$0xff]
        %v1391 = vld [vmem:[%s467 + $0xc8] sm:$0xff]
        %v1392 = vld [vmem:[%s467 + $0xd0] sm:$0xff]
        %v1393 = vld [vmem:[%s467 + $0xd8] sm:$0xff]
        %v1394 = vld [vmem:[%s467 + $0xe0] sm:$0xff]
        %v1395 = vld [vmem:[%s467 + $0xe8] sm:$0xff]
        %v1396 = vld [vmem:[%s467 + $0xf0] sm:$0xff]
        %v1397 = vld [vmem:[%s467 + $0xf8] sm:$0xff]
        %v1398 = vld [vmem:[#allocation10] sm:$0xff]
        %v1399 = vld [vmem:[#allocation10 + $0x8] sm:$0xff]
        %v1400 = vld [vmem:[#allocation10 + $0x10] sm:$0xff]
        %v1401 = vld [vmem:[#allocation10 + $0x18] sm:$0xff]
        %v1402 = vld [vmem:[#allocation10 + $0x20] sm:$0xff]
        %v1403 = vld [vmem:[#allocation10 + $0x28] sm:$0xff]
        %v1404 = vld [vmem:[#allocation10 + $0x30] sm:$0xff]
        %v1405 = vld [vmem:[#allocation10 + $0x38] sm:$0xff]
        %v1406 = vld [vmem:[#allocation10 + $0x40] sm:$0xff]
        %v1407 = vld [vmem:[#allocation10 + $0x48] sm:$0xff]
        %v1408 = vld [vmem:[#allocation10 + $0x50] sm:$0xff]
        %v1409 = vld [vmem:[#allocation10 + $0x58] sm:$0xff]
        %v1410 = vld [vmem:[#allocation10 + $0x60] sm:$0xff]
        %v1411 = vld [vmem:[#allocation10 + $0x68] sm:$0xff]
        %v1412 = vld [vmem:[#allocation10 + $0x70] sm:$0xff]
        %v1413 = vld [vmem:[#allocation10 + $0x78] sm:$0xff]
        %v1414 = vld [vmem:[#allocation10 + $0x80] sm:$0xff]
        %v1415 = vld [vmem:[#allocation10 + $0x88] sm:$0xff]
        %v1416 = vld [vmem:[#allocation10 + $0x90] sm:$0xff]
        %v1417 = vld [vmem:[#allocation10 + $0x98] sm:$0xff]
        %v1418 = vld [vmem:[#allocation10 + $0xa0] sm:$0xff]
        %v1419 = vld [vmem:[#allocation10 + $0xa8] sm:$0xff]
        %v1420 = vld [vmem:[#allocation10 + $0xb0] sm:$0xff]
        %v1421 = vld [vmem:[#allocation10 + $0xb8] sm:$0xff]
        %v1422 = vld [vmem:[#allocation10 + $0xc0] sm:$0xff]
        %v1423 = vld [vmem:[#allocation10 + $0xc8] sm:$0xff]
        %v1424 = vld [vmem:[#allocation10 + $0xd0] sm:$0xff]
        %v1425 = vld [vmem:[#allocation10 + $0xd8] sm:$0xff]
        %v1426 = vld [vmem:[#allocation10 + $0xe0] sm:$0xff]
        %v1427 = vld [vmem:[#allocation10 + $0xe8] sm:$0xff]
        %v1428 = vld [vmem:[#allocation10 + $0xf0] sm:$0xff]
        %v1429 = vld [vmem:[#allocation10 + $0xf8] sm:$0xff]
        %v1430 = vld [vmem:[%s6] sm:$0x3]
        %v1432 = vlaneseq
        %v1433 = vshrl.u32 %v1432, 7
        %v1434 = vsub.s32 0, %v1433
        %v1435 = vrot.slane %v1430, %v1434
        %v1436 = vlaneseq
        %v1437 = vshrl.u32 %v1436, 7
        %v1438 = vsub.s32 1, %v1437
        %v1439 = vrot.slane %v1430, %v1438
        %v1474 = vunpack.c.l.b16 %v1366
        %v1475 = vunpack.c.h.b16 %v1366
        %v1476 = vunpack.c.l.b16 %v1367
        %v1477 = vunpack.c.h.b16 %v1367
        %v1478 = vunpack.c.l.b16 %v1368
        %v1479 = vunpack.c.h.b16 %v1368
        %v1480 = vunpack.c.l.b16 %v1369
        %v1481 = vunpack.c.h.b16 %v1369
        %v1482 = vunpack.c.l.b16 %v1370
        %v1483 = vunpack.c.h.b16 %v1370
        %v1484 = vunpack.c.l.b16 %v1371
        %v1485 = vunpack.c.h.b16 %v1371
        %v1486 = vunpack.c.l.b16 %v1372
        %v1487 = vunpack.c.h.b16 %v1372
        %v1488 = vunpack.c.l.b16 %v1373
        %v1489 = vunpack.c.h.b16 %v1373
        %v1490 = vunpack.c.l.b16 %v1374
        %v1491 = vunpack.c.h.b16 %v1374
        %v1492 = vunpack.c.l.b16 %v1375
        %v1493 = vunpack.c.h.b16 %v1375
        %v1494 = vunpack.c.l.b16 %v1376
        %v1495 = vunpack.c.h.b16 %v1376
        %v1496 = vunpack.c.l.b16 %v1377
        %v1497 = vunpack.c.h.b16 %v1377
        %v1498 = vunpack.c.l.b16 %v1378
        %v1499 = vunpack.c.h.b16 %v1378
        %v1500 = vunpack.c.l.b16 %v1379
        %v1501 = vunpack.c.h.b16 %v1379
        %v1502 = vunpack.c.l.b16 %v1380
        %v1503 = vunpack.c.h.b16 %v1380
        %v1504 = vunpack.c.l.b16 %v1381
        %v1505 = vunpack.c.h.b16 %v1381
        %v1506 = vunpack.c.l.b16 %v1382
        %v1507 = vunpack.c.h.b16 %v1382
        %v1508 = vunpack.c.l.b16 %v1383
        %v1509 = vunpack.c.h.b16 %v1383
        %v1510 = vunpack.c.l.b16 %v1384
        %v1511 = vunpack.c.h.b16 %v1384
        %v1512 = vunpack.c.l.b16 %v1385
        %v1513 = vunpack.c.h.b16 %v1385
        %v1514 = vunpack.c.l.b16 %v1386
        %v1515 = vunpack.c.h.b16 %v1386
        %v1516 = vunpack.c.l.b16 %v1387
        %v1517 = vunpack.c.h.b16 %v1387
        %v1518 = vunpack.c.l.b16 %v1388
        %v1519 = vunpack.c.h.b16 %v1388
        %v1520 = vunpack.c.l.b16 %v1389
        %v1521 = vunpack.c.h.b16 %v1389
        %v1522 = vunpack.c.l.b16 %v1390
        %v1523 = vunpack.c.h.b16 %v1390
        %v1524 = vunpack.c.l.b16 %v1391
        %v1525 = vunpack.c.h.b16 %v1391
        %v1526 = vunpack.c.l.b16 %v1392
        %v1527 = vunpack.c.h.b16 %v1392
        %v1528 = vunpack.c.l.b16 %v1393
        %v1529 = vunpack.c.h.b16 %v1393
        %v1530 = vunpack.c.l.b16 %v1394
        %v1531 = vunpack.c.h.b16 %v1394
        %v1532 = vunpack.c.l.b16 %v1395
        %v1533 = vunpack.c.h.b16 %v1395
        %v1534 = vunpack.c.l.b16 %v1396
        %v1535 = vunpack.c.h.b16 %v1396
        %v1536 = vunpack.c.l.b16 %v1397
        %v1537 = vunpack.c.h.b16 %v1397
        %v1538 = vpack.c.b16 %v1476, %v1474
        %v1539 = vpack.c.b16 %v1477, %v1475
        %v1540 = vpack.c.b16 %v1480, %v1478
        %v1541 = vpack.c.b16 %v1481, %v1479
        %v1542 = vpack.c.b16 %v1484, %v1482
        %v1543 = vpack.c.b16 %v1485, %v1483
        %v1544 = vpack.c.b16 %v1488, %v1486
        %v1545 = vpack.c.b16 %v1489, %v1487
        %v1546 = vpack.c.b16 %v1492, %v1490
        %v1547 = vpack.c.b16 %v1493, %v1491
        %v1548 = vpack.c.b16 %v1496, %v1494
        %v1549 = vpack.c.b16 %v1497, %v1495
        %v1550 = vpack.c.b16 %v1500, %v1498
        %v1551 = vpack.c.b16 %v1501, %v1499
        %v1552 = vpack.c.b16 %v1504, %v1502
        %v1553 = vpack.c.b16 %v1505, %v1503
        %v1554 = vpack.c.b16 %v1508, %v1506
        %v1555 = vpack.c.b16 %v1509, %v1507
        %v1556 = vpack.c.b16 %v1512, %v1510
        %v1557 = vpack.c.b16 %v1513, %v1511
        %v1558 = vpack.c.b16 %v1516, %v1514
        %v1559 = vpack.c.b16 %v1517, %v1515
        %v1560 = vpack.c.b16 %v1520, %v1518
        %v1561 = vpack.c.b16 %v1521, %v1519
        %v1562 = vpack.c.b16 %v1524, %v1522
        %v1563 = vpack.c.b16 %v1525, %v1523
        %v1564 = vpack.c.b16 %v1528, %v1526
        %v1565 = vpack.c.b16 %v1529, %v1527
        %v1566 = vpack.c.b16 %v1532, %v1530
        %v1567 = vpack.c.b16 %v1533, %v1531
        %v1568 = vpack.c.b16 %v1536, %v1534
        %v1569 = vpack.c.b16 %v1537, %v1535
        %v1634 = vunpack.c.l.b16 %v1398
        %v1635 = vunpack.c.h.b16 %v1398
        %v1636 = vunpack.c.l.b16 %v1399
        %v1637 = vunpack.c.h.b16 %v1399
        %v1638 = vunpack.c.l.b16 %v1400
        %v1639 = vunpack.c.h.b16 %v1400
        %v1640 = vunpack.c.l.b16 %v1401
        %v1641 = vunpack.c.h.b16 %v1401
        %v1642 = vunpack.c.l.b16 %v1402
        %v1643 = vunpack.c.h.b16 %v1402
        %v1644 = vunpack.c.l.b16 %v1403
        %v1645 = vunpack.c.h.b16 %v1403
        %v1646 = vunpack.c.l.b16 %v1404
        %v1647 = vunpack.c.h.b16 %v1404
        %v1648 = vunpack.c.l.b16 %v1405
        %v1649 = vunpack.c.h.b16 %v1405
        %v1650 = vunpack.c.l.b16 %v1406
        %v1651 = vunpack.c.h.b16 %v1406
        %v1652 = vunpack.c.l.b16 %v1407
        %v1653 = vunpack.c.h.b16 %v1407
        %v1654 = vunpack.c.l.b16 %v1408
        %v1655 = vunpack.c.h.b16 %v1408
        %v1656 = vunpack.c.l.b16 %v1409
        %v1657 = vunpack.c.h.b16 %v1409
        %v1658 = vunpack.c.l.b16 %v1410
        %v1659 = vunpack.c.h.b16 %v1410
        %v1660 = vunpack.c.l.b16 %v1411
        %v1661 = vunpack.c.h.b16 %v1411
        %v1662 = vunpack.c.l.b16 %v1412
        %v1663 = vunpack.c.h.b16 %v1412
        %v1664 = vunpack.c.l.b16 %v1413
        %v1665 = vunpack.c.h.b16 %v1413
        %v1666 = vunpack.c.l.b16 %v1414
        %v1667 = vunpack.c.h.b16 %v1414
        %v1668 = vunpack.c.l.b16 %v1415
        %v1669 = vunpack.c.h.b16 %v1415
        %v1670 = vunpack.c.l.b16 %v1416
        %v1671 = vunpack.c.h.b16 %v1416
        %v1672 = vunpack.c.l.b16 %v1417
        %v1673 = vunpack.c.h.b16 %v1417
        %v1674 = vunpack.c.l.b16 %v1418
        %v1675 = vunpack.c.h.b16 %v1418
        %v1676 = vunpack.c.l.b16 %v1419
        %v1677 = vunpack.c.h.b16 %v1419
        %v1678 = vunpack.c.l.b16 %v1420
        %v1679 = vunpack.c.h.b16 %v1420
        %v1680 = vunpack.c.l.b16 %v1421
        %v1681 = vunpack.c.h.b16 %v1421
        %v1682 = vunpack.c.l.b16 %v1422
        %v1683 = vunpack.c.h.b16 %v1422
        %v1684 = vunpack.c.l.b16 %v1423
        %v1685 = vunpack.c.h.b16 %v1423
        %v1686 = vunpack.c.l.b16 %v1424
        %v1687 = vunpack.c.h.b16 %v1424
        %v1688 = vunpack.c.l.b16 %v1425
        %v1689 = vunpack.c.h.b16 %v1425
        %v1690 = vunpack.c.l.b16 %v1426
        %v1691 = vunpack.c.h.b16 %v1426
        %v1692 = vunpack.c.l.b16 %v1427
        %v1693 = vunpack.c.h.b16 %v1427
        %v1694 = vunpack.c.l.b16 %v1428
        %v1695 = vunpack.c.h.b16 %v1428
        %v1696 = vunpack.c.l.b16 %v1429
        %v1697 = vunpack.c.h.b16 %v1429
        %v1698 = vpack.c.b16 %v1636, %v1634
        %v1699 = vpack.c.b16 %v1637, %v1635
        %v1700 = vpack.c.b16 %v1640, %v1638
        %v1701 = vpack.c.b16 %v1641, %v1639
        %v1702 = vpack.c.b16 %v1644, %v1642
        %v1703 = vpack.c.b16 %v1645, %v1643
        %v1704 = vpack.c.b16 %v1648, %v1646
        %v1705 = vpack.c.b16 %v1649, %v1647
        %v1706 = vpack.c.b16 %v1652, %v1650
        %v1707 = vpack.c.b16 %v1653, %v1651
        %v1708 = vpack.c.b16 %v1656, %v1654
        %v1709 = vpack.c.b16 %v1657, %v1655
        %v1710 = vpack.c.b16 %v1660, %v1658
        %v1711 = vpack.c.b16 %v1661, %v1659
        %v1712 = vpack.c.b16 %v1664, %v1662
        %v1713 = vpack.c.b16 %v1665, %v1663
        %v1714 = vpack.c.b16 %v1668, %v1666
        %v1715 = vpack.c.b16 %v1669, %v1667
        %v1716 = vpack.c.b16 %v1672, %v1670
        %v1717 = vpack.c.b16 %v1673, %v1671
        %v1718 = vpack.c.b16 %v1676, %v1674
        %v1719 = vpack.c.b16 %v1677, %v1675
        %v1720 = vpack.c.b16 %v1680, %v1678
        %v1721 = vpack.c.b16 %v1681, %v1679
        %v1722 = vpack.c.b16 %v1684, %v1682
        %v1723 = vpack.c.b16 %v1685, %v1683
        %v1724 = vpack.c.b16 %v1688, %v1686
        %v1725 = vpack.c.b16 %v1689, %v1687
        %v1726 = vpack.c.b16 %v1692, %v1690
        %v1727 = vpack.c.b16 %v1693, %v1691
        %v1728 = vpack.c.b16 %v1696, %v1694
        %v1729 = vpack.c.b16 %v1697, %v1695
        %1762 = vmatprep.subr.bf16.mxu0 %v1699
        %1763 = vmatpush1.bf16.msra.mxu0 %v1698
        %1764 = vmatprep.subr.bf16.mxu0 %v1701
        %1765 = vmatpush1.bf16.msra.mxu0 %v1700
        %1766 = vmatprep.subr.bf16.mxu0 %v1703
        %1767 = vmatpush1.bf16.msra.mxu0 %v1702
        %1768 = vmatprep.subr.bf16.mxu0 %v1705
        %1769 = vmatpush1.bf16.msra.mxu0 %v1704
        %1770 = vmatprep.subr.bf16.mxu0 %v1707
        %1771 = vmatpush1.bf16.msra.mxu0 %v1706
        %1772 = vmatprep.subr.bf16.mxu0 %v1709
        %1773 = vmatpush1.bf16.msra.mxu0 %v1708
        %1774 = vmatprep.subr.bf16.mxu0 %v1711
        %1775 = vmatpush1.bf16.msra.mxu0 %v1710
        %1776 = vmatprep.subr.bf16.mxu0 %v1713
        %1777 = vmatpush1.bf16.msra.mxu0 %v1712
        %1778 = vmatprep.subr.bf16.mxu0 %v1715
        %1779 = vmatpush1.bf16.msra.mxu0 %v1714
        %1780 = vmatprep.subr.bf16.mxu0 %v1717
        %1781 = vmatpush1.bf16.msra.mxu0 %v1716
        %1782 = vmatprep.subr.bf16.mxu0 %v1719
        %1783 = vmatpush1.bf16.msra.mxu0 %v1718
        %1784 = vmatprep.subr.bf16.mxu0 %v1721
        %1785 = vmatpush1.bf16.msra.mxu0 %v1720
        %1786 = vmatprep.subr.bf16.mxu0 %v1723
        %1787 = vmatpush1.bf16.msra.mxu0 %v1722
        %1788 = vmatprep.subr.bf16.mxu0 %v1725
        %1789 = vmatpush1.bf16.msra.mxu0 %v1724
        %1790 = vmatprep.subr.bf16.mxu0 %v1727
        %1791 = vmatpush1.bf16.msra.mxu0 %v1726
        %1792 = vmatprep.subr.bf16.mxu0 %v1729
        %1793 = vmatpush1.bf16.msra.mxu0 %v1728
        %1794 = vmatprep.mubr.bf16.mxu0 %v1539
        %1795 = vmatmul.mubr.bf16.gmra.mrb[0].mxu0 %v1538
        %v1796 = vpop.f32.mrb[0].mxu0
        %v1797 = vadd.f32 %v1435, %v1796
        %v1798 = vpop.f32.mrb[0].mxu0
        %v1799 = vadd.f32 %v1439, %v1798
        %v1800 = vpop.f32.mrb[0].mxu0
        %v1801 = vadd.f32 %v1435, %v1800
        %v1802 = vpop.f32.mrb[0].mxu0
        %v1803 = vadd.f32 %v1439, %v1802
        %1804 = vmatprep.mubr.bf16.mxu0 %v1541
        %1805 = vmatmul.mubr.bf16.gmra.mrb[0].mxu0 %v1540
        %v1806 = vpop.f32.mrb[0].mxu0
        %v1807 = vadd.f32 %v1435, %v1806
        %v1808 = vpop.f32.mrb[0].mxu0
        %v1809 = vadd.f32 %v1439, %v1808
        %v1810 = vpop.f32.mrb[0].mxu0
        %v1811 = vadd.f32 %v1435, %v1810
        %v1812 = vpop.f32.mrb[0].mxu0
        %v1813 = vadd.f32 %v1439, %v1812
        %1814 = vmatprep.mubr.bf16.mxu0 %v1543
        %1815 = vmatmul.mubr.bf16.gmra.mrb[0].mxu0 %v1542
        %v1816 = vpop.f32.mrb[0].mxu0
        %v1817 = vadd.f32 %v1435, %v1816
        %v1818 = vpop.f32.mrb[0].mxu0
        %v1819 = vadd.f32 %v1439, %v1818
        %v1820 = vpop.f32.mrb[0].mxu0
        %v1821 = vadd.f32 %v1435, %v1820
        %v1822 = vpop.f32.mrb[0].mxu0
        %v1823 = vadd.f32 %v1439, %v1822
        %1824 = vmatprep.mubr.bf16.mxu0 %v1545
        %1825 = vmatmul.mubr.bf16.gmra.mrb[0].mxu0 %v1544
        %v1826 = vpop.f32.mrb[0].mxu0
        %v1827 = vadd.f32 %v1435, %v1826
        %v1828 = vpop.f32.mrb[0].mxu0
        %v1829 = vadd.f32 %v1439, %v1828
        %v1830 = vpop.f32.mrb[0].mxu0
        %v1831 = vadd.f32 %v1435, %v1830
        %v1832 = vpop.f32.mrb[0].mxu0
        %v1833 = vadd.f32 %v1439, %v1832
        %1834 = vmatprep.mubr.bf16.mxu0 %v1547
        %1835 = vmatmul.mubr.bf16.gmra.mrb[0].mxu0 %v1546
        %v1836 = vpop.f32.mrb[0].mxu0
        %v1837 = vadd.f32 %v1435, %v1836
        %v1838 = vpop.f32.mrb[0].mxu0
        %v1839 = vadd.f32 %v1439, %v1838
        %v1840 = vpop.f32.mrb[0].mxu0
        %v1841 = vadd.f32 %v1435, %v1840
        %v1842 = vpop.f32.mrb[0].mxu0
        %v1843 = vadd.f32 %v1439, %v1842
        %1844 = vmatprep.mubr.bf16.mxu0 %v1549
        %1845 = vmatmul.mubr.bf16.gmra.mrb[0].mxu0 %v1548
        %v1846 = vpop.f32.mrb[0].mxu0
        %v1847 = vadd.f32 %v1435, %v1846
        %v1848 = vpop.f32.mrb[0].mxu0
        %v1849 = vadd.f32 %v1439, %v1848
        %v1850 = vpop.f32.mrb[0].mxu0
        %v1851 = vadd.f32 %v1435, %v1850
        %v1852 = vpop.f32.mrb[0].mxu0
        %v1853 = vadd.f32 %v1439, %v1852
        %1854 = vmatprep.mubr.bf16.mxu0 %v1551
        %1855 = vmatmul.mubr.bf16.gmra.mrb[0].mxu0 %v1550
        %v1856 = vpop.f32.mrb[0].mxu0
        %v1857 = vadd.f32 %v1435, %v1856
        %v1858 = vpop.f32.mrb[0].mxu0
        %v1859 = vadd.f32 %v1439, %v1858
        %v1860 = vpop.f32.mrb[0].mxu0
        %v1861 = vadd.f32 %v1435, %v1860
        %v1862 = vpop.f32.mrb[0].mxu0
        %v1863 = vadd.f32 %v1439, %v1862
        %1864 = vmatprep.mubr.bf16.mxu0 %v1553
        %1865 = vmatmul.mubr.bf16.gmra.mrb[0].mxu0 %v1552
        %v1866 = vpop.f32.mrb[0].mxu0
        %v1867 = vadd.f32 %v1435, %v1866
        %v1868 = vpop.f32.mrb[0].mxu0
        %v1869 = vadd.f32 %v1439, %v1868
        %v1870 = vpop.f32.mrb[0].mxu0
        %v1871 = vadd.f32 %v1435, %v1870
        %v1872 = vpop.f32.mrb[0].mxu0
        %v1873 = vadd.f32 %v1439, %v1872
        %1874 = vmatprep.mubr.bf16.mxu0 %v1555
        %1875 = vmatmul.mubr.bf16.gmra.mrb[0].mxu0 %v1554
        %v1876 = vpop.f32.mrb[0].mxu0
        %v1877 = vadd.f32 %v1435, %v1876
        %v1878 = vpop.f32.mrb[0].mxu0
        %v1879 = vadd.f32 %v1439, %v1878
        %v1880 = vpop.f32.mrb[0].mxu0
        %v1881 = vadd.f32 %v1435, %v1880
        %v1882 = vpop.f32.mrb[0].mxu0
        %v1883 = vadd.f32 %v1439, %v1882
        %1884 = vmatprep.mubr.bf16.mxu0 %v1557
        %1885 = vmatmul.mubr.bf16.gmra.mrb[0].mxu0 %v1556
        %v1886 = vpop.f32.mrb[0].mxu0
        %v1887 = vadd.f32 %v1435, %v1886
        %v1888 = vpop.f32.mrb[0].mxu0
        %v1889 = vadd.f32 %v1439, %v1888
        %v1890 = vpop.f32.mrb[0].mxu0
        %v1891 = vadd.f32 %v1435, %v1890
        %v1892 = vpop.f32.mrb[0].mxu0
        %v1893 = vadd.f32 %v1439, %v1892
        %1894 = vmatprep.mubr.bf16.mxu0 %v1559
        %1895 = vmatmul.mubr.bf16.gmra.mrb[0].mxu0 %v1558
        %v1896 = vpop.f32.mrb[0].mxu0
        %v1897 = vadd.f32 %v1435, %v1896
        %v1898 = vpop.f32.mrb[0].mxu0
        %v1899 = vadd.f32 %v1439, %v1898
        %v1900 = vpop.f32.mrb[0].mxu0
        %v1901 = vadd.f32 %v1435, %v1900
        %v1902 = vpop.f32.mrb[0].mxu0
        %v1903 = vadd.f32 %v1439, %v1902
        %1904 = vmatprep.mubr.bf16.mxu0 %v1561
        %1905 = vmatmul.mubr.bf16.gmra.mrb[0].mxu0 %v1560
        %v1906 = vpop.f32.mrb[0].mxu0
        %v1907 = vadd.f32 %v1435, %v1906
        %v1908 = vpop.f32.mrb[0].mxu0
        %v1909 = vadd.f32 %v1439, %v1908
        %v1910 = vpop.f32.mrb[0].mxu0
        %v1911 = vadd.f32 %v1435, %v1910
        %v1912 = vpop.f32.mrb[0].mxu0
        %v1913 = vadd.f32 %v1439, %v1912
        %1914 = vmatprep.mubr.bf16.mxu0 %v1563
        %1915 = vmatmul.mubr.bf16.gmra.mrb[0].mxu0 %v1562
        %v1916 = vpop.f32.mrb[0].mxu0
        %v1917 = vadd.f32 %v1435, %v1916
        %v1918 = vpop.f32.mrb[0].mxu0
        %v1919 = vadd.f32 %v1439, %v1918
        %v1920 = vpop.f32.mrb[0].mxu0
        %v1921 = vadd.f32 %v1435, %v1920
        %v1922 = vpop.f32.mrb[0].mxu0
        %v1923 = vadd.f32 %v1439, %v1922
        %1924 = vmatprep.mubr.bf16.mxu0 %v1565
        %1925 = vmatmul.mubr.bf16.gmra.mrb[0].mxu0 %v1564
        %v1926 = vpop.f32.mrb[0].mxu0
        %v1927 = vadd.f32 %v1435, %v1926
        %v1928 = vpop.f32.mrb[0].mxu0
        %v1929 = vadd.f32 %v1439, %v1928
        %v1930 = vpop.f32.mrb[0].mxu0
        %v1931 = vadd.f32 %v1435, %v1930
        %v1932 = vpop.f32.mrb[0].mxu0
        %v1933 = vadd.f32 %v1439, %v1932
        %1934 = vmatprep.mubr.bf16.mxu0 %v1567
        %1935 = vmatmul.mubr.bf16.gmra.mrb[0].mxu0 %v1566
        %v1936 = vpop.f32.mrb[0].mxu0
        %v1937 = vadd.f32 %v1435, %v1936
        %v1938 = vpop.f32.mrb[0].mxu0
        %v1939 = vadd.f32 %v1439, %v1938
        %v1940 = vpop.f32.mrb[0].mxu0
        %v1941 = vadd.f32 %v1435, %v1940
        %v1942 = vpop.f32.mrb[0].mxu0
        %v1943 = vadd.f32 %v1439, %v1942
        %1944 = vmatprep.mubr.bf16.mxu0 %v1569
        %1945 = vmatmul.mubr.bf16.gmra.mrb[0].mxu0 %v1568
        %v1946 = vpop.f32.mrb[0].mxu0
        %v1947 = vadd.f32 %v1435, %v1946
        %v1948 = vpop.f32.mrb[0].mxu0
        %v1949 = vadd.f32 %v1439, %v1948
        %v1950 = vpop.f32.mrb[0].mxu0
        %v1951 = vadd.f32 %v1435, %v1950
        %v1952 = vpop.f32.mrb[0].mxu0
        %v1953 = vadd.f32 %v1439, %v1952
        %1954 = vdwg.mxu0
        %v1955 = vpack.c.bf16 %v1801, %v1797
        %v1956 = vpack.c.bf16 %v1803, %v1799
        %v1957 = vpack.c.bf16 %v1811, %v1807
        %v1958 = vpack.c.bf16 %v1813, %v1809
        %v1959 = vpack.c.bf16 %v1821, %v1817
        %v1960 = vpack.c.bf16 %v1823, %v1819
        %v1961 = vpack.c.bf16 %v1831, %v1827
        %v1962 = vpack.c.bf16 %v1833, %v1829
        %v1963 = vpack.c.bf16 %v1841, %v1837
        %v1964 = vpack.c.bf16 %v1843, %v1839
        %v1965 = vpack.c.bf16 %v1851, %v1847
        %v1966 = vpack.c.bf16 %v1853, %v1849
        %v1967 = vpack.c.bf16 %v1861, %v1857
        %v1968 = vpack.c.bf16 %v1863, %v1859
        %v1969 = vpack.c.bf16 %v1871, %v1867
        %v1970 = vpack.c.bf16 %v1873, %v1869
        %v1971 = vpack.c.bf16 %v1881, %v1877
        %v1972 = vpack.c.bf16 %v1883, %v1879
        %v1973 = vpack.c.bf16 %v1891, %v1887
        %v1974 = vpack.c.bf16 %v1893, %v1889
        %v1975 = vpack.c.bf16 %v1901, %v1897
        %v1976 = vpack.c.bf16 %v1903, %v1899
        %v1977 = vpack.c.bf16 %v1911, %v1907
        %v1978 = vpack.c.bf16 %v1913, %v1909
        %v1979 = vpack.c.bf16 %v1921, %v1917
        %v1980 = vpack.c.bf16 %v1923, %v1919
        %v1981 = vpack.c.bf16 %v1931, %v1927
        %v1982 = vpack.c.bf16 %v1933, %v1929
        %v1983 = vpack.c.bf16 %v1941, %v1937
        %v1984 = vpack.c.bf16 %v1943, %v1939
        %v1985 = vpack.c.bf16 %v1951, %v1947
        %v1986 = vpack.c.bf16 %v1953, %v1949
        %v2019 = vunpack.c.l.b16 %v1955
        %v2020 = vunpack.c.l.b16 %v1956
        %v2021 = vunpack.c.h.b16 %v1955
        %v2022 = vunpack.c.h.b16 %v1956
        %v2023 = vunpack.c.l.b16 %v1957
        %v2024 = vunpack.c.l.b16 %v1958
        %v2025 = vunpack.c.h.b16 %v1957
        %v2026 = vunpack.c.h.b16 %v1958
        %v2027 = vunpack.c.l.b16 %v1959
        %v2028 = vunpack.c.l.b16 %v1960
        %v2029 = vunpack.c.h.b16 %v1959
        %v2030 = vunpack.c.h.b16 %v1960
        %v2031 = vunpack.c.l.b16 %v1961
        %v2032 = vunpack.c.l.b16 %v1962
        %v2033 = vunpack.c.h.b16 %v1961
        %v2034 = vunpack.c.h.b16 %v1962
        %v2035 = vunpack.c.l.b16 %v1963
        %v2036 = vunpack.c.l.b16 %v1964
        %v2037 = vunpack.c.h.b16 %v1963
        %v2038 = vunpack.c.h.b16 %v1964
        %v2039 = vunpack.c.l.b16 %v1965
        %v2040 = vunpack.c.l.b16 %v1966
        %v2041 = vunpack.c.h.b16 %v1965
        %v2042 = vunpack.c.h.b16 %v1966
        %v2043 = vunpack.c.l.b16 %v1967
        %v2044 = vunpack.c.l.b16 %v1968
        %v2045 = vunpack.c.h.b16 %v1967
        %v2046 = vunpack.c.h.b16 %v1968
        %v2047 = vunpack.c.l.b16 %v1969
        %v2048 = vunpack.c.l.b16 %v1970
        %v2049 = vunpack.c.h.b16 %v1969
        %v2050 = vunpack.c.h.b16 %v1970
        %v2051 = vunpack.c.l.b16 %v1971
        %v2052 = vunpack.c.l.b16 %v1972
        %v2053 = vunpack.c.h.b16 %v1971
        %v2054 = vunpack.c.h.b16 %v1972
        %v2055 = vunpack.c.l.b16 %v1973
        %v2056 = vunpack.c.l.b16 %v1974
        %v2057 = vunpack.c.h.b16 %v1973
        %v2058 = vunpack.c.h.b16 %v1974
        %v2059 = vunpack.c.l.b16 %v1975
        %v2060 = vunpack.c.l.b16 %v1976
        %v2061 = vunpack.c.h.b16 %v1975
        %v2062 = vunpack.c.h.b16 %v1976
        %v2063 = vunpack.c.l.b16 %v1977
        %v2064 = vunpack.c.l.b16 %v1978
        %v2065 = vunpack.c.h.b16 %v1977
        %v2066 = vunpack.c.h.b16 %v1978
        %v2067 = vunpack.c.l.b16 %v1979
        %v2068 = vunpack.c.l.b16 %v1980
        %v2069 = vunpack.c.h.b16 %v1979
        %v2070 = vunpack.c.h.b16 %v1980
        %v2071 = vunpack.c.l.b16 %v1981
        %v2072 = vunpack.c.l.b16 %v1982
        %v2073 = vunpack.c.h.b16 %v1981
        %v2074 = vunpack.c.h.b16 %v1982
        %v2075 = vunpack.c.l.b16 %v1983
        %v2076 = vunpack.c.l.b16 %v1984
        %v2077 = vunpack.c.h.b16 %v1983
        %v2078 = vunpack.c.h.b16 %v1984
        %v2079 = vunpack.c.l.b16 %v1985
        %v2080 = vunpack.c.l.b16 %v1986
        %v2081 = vunpack.c.h.b16 %v1985
        %v2082 = vunpack.c.h.b16 %v1986
        %v2083 = vpack.c.b16 %v2020, %v2019
        %v2084 = vpack.c.b16 %v2022, %v2021
        %v2085 = vpack.c.b16 %v2024, %v2023
        %v2086 = vpack.c.b16 %v2026, %v2025
        %v2087 = vpack.c.b16 %v2028, %v2027
        %v2088 = vpack.c.b16 %v2030, %v2029
        %v2089 = vpack.c.b16 %v2032, %v2031
        %v2090 = vpack.c.b16 %v2034, %v2033
        %v2091 = vpack.c.b16 %v2036, %v2035
        %v2092 = vpack.c.b16 %v2038, %v2037
        %v2093 = vpack.c.b16 %v2040, %v2039
        %v2094 = vpack.c.b16 %v2042, %v2041
        %v2095 = vpack.c.b16 %v2044, %v2043
        %v2096 = vpack.c.b16 %v2046, %v2045
        %v2097 = vpack.c.b16 %v2048, %v2047
        %v2098 = vpack.c.b16 %v2050, %v2049
        %v2099 = vpack.c.b16 %v2052, %v2051
        %v2100 = vpack.c.b16 %v2054, %v2053
        %v2101 = vpack.c.b16 %v2056, %v2055
        %v2102 = vpack.c.b16 %v2058, %v2057
        %v2103 = vpack.c.b16 %v2060, %v2059
        %v2104 = vpack.c.b16 %v2062, %v2061
        %v2105 = vpack.c.b16 %v2064, %v2063
        %v2106 = vpack.c.b16 %v2066, %v2065
        %v2107 = vpack.c.b16 %v2068, %v2067
        %v2108 = vpack.c.b16 %v2070, %v2069
        %v2109 = vpack.c.b16 %v2072, %v2071
        %v2110 = vpack.c.b16 %v2074, %v2073
        %v2111 = vpack.c.b16 %v2076, %v2075
        %v2112 = vpack.c.b16 %v2078, %v2077
        %v2113 = vpack.c.b16 %v2080, %v2079
        %v2114 = vpack.c.b16 %v2082, %v2081
        %2147 = vst [vmem:[%s539] sm:$0xff] %v2083
        %2148 = vst [vmem:[%s539 + $0x8] sm:$0xff] %v2084
        %2149 = vst [vmem:[%s539 + $0x10] sm:$0xff] %v2085
        %2150 = vst [vmem:[%s539 + $0x18] sm:$0xff] %v2086
        %2151 = vst [vmem:[%s539 + $0x20] sm:$0xff] %v2087
        %2152 = vst [vmem:[%s539 + $0x28] sm:$0xff] %v2088
        %2153 = vst [vmem:[%s539 + $0x30] sm:$0xff] %v2089
        %2154 = vst [vmem:[%s539 + $0x38] sm:$0xff] %v2090
        %2155 = vst [vmem:[%s539 + $0x40] sm:$0xff] %v2091
        %2156 = vst [vmem:[%s539 + $0x48] sm:$0xff] %v2092
        %2157 = vst [vmem:[%s539 + $0x50] sm:$0xff] %v2093
        %2158 = vst [vmem:[%s539 + $0x58] sm:$0xff] %v2094
        %2159 = vst [vmem:[%s539 + $0x60] sm:$0xff] %v2095
        %2160 = vst [vmem:[%s539 + $0x68] sm:$0xff] %v2096
        %2161 = vst [vmem:[%s539 + $0x70] sm:$0xff] %v2097
        %2162 = vst [vmem:[%s539 + $0x78] sm:$0xff] %v2098
        %2163 = vst [vmem:[%s539 + $0x80] sm:$0xff] %v2099
        %2164 = vst [vmem:[%s539 + $0x88] sm:$0xff] %v2100
        %2165 = vst [vmem:[%s539 + $0x90] sm:$0xff] %v2101
        %2166 = vst [vmem:[%s539 + $0x98] sm:$0xff] %v2102
        %2167 = vst [vmem:[%s539 + $0xa0] sm:$0xff] %v2103
        %2168 = vst [vmem:[%s539 + $0xa8] sm:$0xff] %v2104
        %2169 = vst [vmem:[%s539 + $0xb0] sm:$0xff] %v2105
        %2170 = vst [vmem:[%s539 + $0xb8] sm:$0xff] %v2106
        %2171 = vst [vmem:[%s539 + $0xc0] sm:$0xff] %v2107
        %2172 = vst [vmem:[%s539 + $0xc8] sm:$0xff] %v2108
        %2173 = vst [vmem:[%s539 + $0xd0] sm:$0xff] %v2109
        %2174 = vst [vmem:[%s539 + $0xd8] sm:$0xff] %v2110
        %2175 = vst [vmem:[%s539 + $0xe0] sm:$0xff] %v2111
        %2176 = vst [vmem:[%s539 + $0xe8] sm:$0xff] %v2112
        %2177 = vst [vmem:[%s539 + $0xf0] sm:$0xff] %v2113
        %2178 = vst [vmem:[%s539 + $0xf8] sm:$0xff] %v2114
        %v2179 = vld [vmem:[%s476] sm:$0xff]
        %v2180 = vld [vmem:[%s476 + $0x8] sm:$0xff]
        %v2181 = vld [vmem:[%s476 + $0x10] sm:$0xff]
        %v2182 = vld [vmem:[%s476 + $0x18] sm:$0xff]
        %v2183 = vld [vmem:[%s476 + $0x20] sm:$0xff]
        %v2184 = vld [vmem:[%s476 + $0x28] sm:$0xff]
        %v2185 = vld [vmem:[%s476 + $0x30] sm:$0xff]
        %v2186 = vld [vmem:[%s476 + $0x38] sm:$0xff]
        %v2187 = vld [vmem:[%s476 + $0x40] sm:$0xff]
        %v2188 = vld [vmem:[%s476 + $0x48] sm:$0xff]
        %v2189 = vld [vmem:[%s476 + $0x50] sm:$0xff]
        %v2190 = vld [vmem:[%s476 + $0x58] sm:$0xff]
        %v2191 = vld [vmem:[%s476 + $0x60] sm:$0xff]
        %v2192 = vld [vmem:[%s476 + $0x68] sm:$0xff]
        %v2193 = vld [vmem:[%s476 + $0x70] sm:$0xff]
        %v2194 = vld [vmem:[%s476 + $0x78] sm:$0xff]
        %v2195 = vld [vmem:[%s476 + $0x80] sm:$0xff]
        %v2196 = vld [vmem:[%s476 + $0x88] sm:$0xff]
        %v2197 = vld [vmem:[%s476 + $0x90] sm:$0xff]
        %v2198 = vld [vmem:[%s476 + $0x98] sm:$0xff]
        %v2199 = vld [vmem:[%s476 + $0xa0] sm:$0xff]
        %v2200 = vld [vmem:[%s476 + $0xa8] sm:$0xff]
        %v2201 = vld [vmem:[%s476 + $0xb0] sm:$0xff]
        %v2202 = vld [vmem:[%s476 + $0xb8] sm:$0xff]
        %v2203 = vld [vmem:[%s476 + $0xc0] sm:$0xff]
        %v2204 = vld [vmem:[%s476 + $0xc8] sm:$0xff]
        %v2205 = vld [vmem:[%s476 + $0xd0] sm:$0xff]
        %v2206 = vld [vmem:[%s476 + $0xd8] sm:$0xff]
        %v2207 = vld [vmem:[%s476 + $0xe0] sm:$0xff]
        %v2208 = vld [vmem:[%s476 + $0xe8] sm:$0xff]
        %v2209 = vld [vmem:[%s476 + $0xf0] sm:$0xff]
        %v2210 = vld [vmem:[%s476 + $0xf8] sm:$0xff]
        %v2211 = vld [vmem:[#allocation11] sm:$0xff]
        %v2212 = vld [vmem:[#allocation11 + $0x8] sm:$0xff]
        %v2213 = vld [vmem:[#allocation11 + $0x10] sm:$0xff]
        %v2214 = vld [vmem:[#allocation11 + $0x18] sm:$0xff]
        %v2215 = vld [vmem:[#allocation11 + $0x20] sm:$0xff]
        %v2216 = vld [vmem:[#allocation11 + $0x28] sm:$0xff]
        %v2217 = vld [vmem:[#allocation11 + $0x30] sm:$0xff]
        %v2218 = vld [vmem:[#allocation11 + $0x38] sm:$0xff]
        %v2219 = vld [vmem:[#allocation11 + $0x40] sm:$0xff]
        %v2220 = vld [vmem:[#allocation11 + $0x48] sm:$0xff]
        %v2221 = vld [vmem:[#allocation11 + $0x50] sm:$0xff]
        %v2222 = vld [vmem:[#allocation11 + $0x58] sm:$0xff]
        %v2223 = vld [vmem:[#allocation11 + $0x60] sm:$0xff]
        %v2224 = vld [vmem:[#allocation11 + $0x68] sm:$0xff]
        %v2225 = vld [vmem:[#allocation11 + $0x70] sm:$0xff]
        %v2226 = vld [vmem:[#allocation11 + $0x78] sm:$0xff]
        %v2227 = vld [vmem:[#allocation11 + $0x80] sm:$0xff]
        %v2228 = vld [vmem:[#allocation11 + $0x88] sm:$0xff]
        %v2229 = vld [vmem:[#allocation11 + $0x90] sm:$0xff]
        %v2230 = vld [vmem:[#allocation11 + $0x98] sm:$0xff]
        %v2231 = vld [vmem:[#allocation11 + $0xa0] sm:$0xff]
        %v2232 = vld [vmem:[#allocation11 + $0xa8] sm:$0xff]
        %v2233 = vld [vmem:[#allocation11 + $0xb0] sm:$0xff]
        %v2234 = vld [vmem:[#allocation11 + $0xb8] sm:$0xff]
        %v2235 = vld [vmem:[#allocation11 + $0xc0] sm:$0xff]
        %v2236 = vld [vmem:[#allocation11 + $0xc8] sm:$0xff]
        %v2237 = vld [vmem:[#allocation11 + $0xd0] sm:$0xff]
        %v2238 = vld [vmem:[#allocation11 + $0xd8] sm:$0xff]
        %v2239 = vld [vmem:[#allocation11 + $0xe0] sm:$0xff]
        %v2240 = vld [vmem:[#allocation11 + $0xe8] sm:$0xff]
        %v2241 = vld [vmem:[#allocation11 + $0xf0] sm:$0xff]
        %v2242 = vld [vmem:[#allocation11 + $0xf8] sm:$0xff]
        %v2243 = vld [vmem:[%s8] sm:$0x3]
        %v2245 = vlaneseq
        %v2246 = vshrl.u32 %v2245, 7
        %v2247 = vsub.s32 0, %v2246
        %v2248 = vrot.slane %v2243, %v2247
        %v2249 = vlaneseq
        %v2250 = vshrl.u32 %v2249, 7
        %v2251 = vsub.s32 1, %v2250
        %v2252 = vrot.slane %v2243, %v2251
        %v2287 = vunpack.c.l.b16 %v2179
        %v2288 = vunpack.c.h.b16 %v2179
        %v2289 = vunpack.c.l.b16 %v2180
        %v2290 = vunpack.c.h.b16 %v2180
        %v2291 = vunpack.c.l.b16 %v2181
        %v2292 = vunpack.c.h.b16 %v2181
        %v2293 = vunpack.c.l.b16 %v2182
        %v2294 = vunpack.c.h.b16 %v2182
        %v2295 = vunpack.c.l.b16 %v2183
        %v2296 = vunpack.c.h.b16 %v2183
        %v2297 = vunpack.c.l.b16 %v2184
        %v2298 = vunpack.c.h.b16 %v2184
        %v2299 = vunpack.c.l.b16 %v2185
        %v2300 = vunpack.c.h.b16 %v2185
        %v2301 = vunpack.c.l.b16 %v2186
        %v2302 = vunpack.c.h.b16 %v2186
        %v2303 = vunpack.c.l.b16 %v2187
        %v2304 = vunpack.c.h.b16 %v2187
        %v2305 = vunpack.c.l.b16 %v2188
        %v2306 = vunpack.c.h.b16 %v2188
        %v2307 = vunpack.c.l.b16 %v2189
        %v2308 = vunpack.c.h.b16 %v2189
        %v2309 = vunpack.c.l.b16 %v2190
        %v2310 = vunpack.c.h.b16 %v2190
        %v2311 = vunpack.c.l.b16 %v2191
        %v2312 = vunpack.c.h.b16 %v2191
        %v2313 = vunpack.c.l.b16 %v2192
        %v2314 = vunpack.c.h.b16 %v2192
        %v2315 = vunpack.c.l.b16 %v2193
        %v2316 = vunpack.c.h.b16 %v2193
        %v2317 = vunpack.c.l.b16 %v2194
        %v2318 = vunpack.c.h.b16 %v2194
        %v2319 = vunpack.c.l.b16 %v2195
        %v2320 = vunpack.c.h.b16 %v2195
        %v2321 = vunpack.c.l.b16 %v2196
        %v2322 = vunpack.c.h.b16 %v2196
        %v2323 = vunpack.c.l.b16 %v2197
        %v2324 = vunpack.c.h.b16 %v2197
        %v2325 = vunpack.c.l.b16 %v2198
        %v2326 = vunpack.c.h.b16 %v2198
        %v2327 = vunpack.c.l.b16 %v2199
        %v2328 = vunpack.c.h.b16 %v2199
        %v2329 = vunpack.c.l.b16 %v2200
        %v2330 = vunpack.c.h.b16 %v2200
        %v2331 = vunpack.c.l.b16 %v2201
        %v2332 = vunpack.c.h.b16 %v2201
        %v2333 = vunpack.c.l.b16 %v2202
        %v2334 = vunpack.c.h.b16 %v2202
        %v2335 = vunpack.c.l.b16 %v2203
        %v2336 = vunpack.c.h.b16 %v2203
        %v2337 = vunpack.c.l.b16 %v2204
        %v2338 = vunpack.c.h.b16 %v2204
        %v2339 = vunpack.c.l.b16 %v2205
        %v2340 = vunpack.c.h.b16 %v2205
        %v2341 = vunpack.c.l.b16 %v2206
        %v2342 = vunpack.c.h.b16 %v2206
        %v2343 = vunpack.c.l.b16 %v2207
        %v2344 = vunpack.c.h.b16 %v2207
        %v2345 = vunpack.c.l.b16 %v2208
        %v2346 = vunpack.c.h.b16 %v2208
        %v2347 = vunpack.c.l.b16 %v2209
        %v2348 = vunpack.c.h.b16 %v2209
        %v2349 = vunpack.c.l.b16 %v2210
        %v2350 = vunpack.c.h.b16 %v2210
        %v2351 = vpack.c.b16 %v2289, %v2287
        %v2352 = vpack.c.b16 %v2290, %v2288
        %v2353 = vpack.c.b16 %v2293, %v2291
        %v2354 = vpack.c.b16 %v2294, %v2292
        %v2355 = vpack.c.b16 %v2297, %v2295
        %v2356 = vpack.c.b16 %v2298, %v2296
        %v2357 = vpack.c.b16 %v2301, %v2299
        %v2358 = vpack.c.b16 %v2302, %v2300
        %v2359 = vpack.c.b16 %v2305, %v2303
        %v2360 = vpack.c.b16 %v2306, %v2304
        %v2361 = vpack.c.b16 %v2309, %v2307
        %v2362 = vpack.c.b16 %v2310, %v2308
        %v2363 = vpack.c.b16 %v2313, %v2311
        %v2364 = vpack.c.b16 %v2314, %v2312
        %v2365 = vpack.c.b16 %v2317, %v2315
        %v2366 = vpack.c.b16 %v2318, %v2316
        %v2367 = vpack.c.b16 %v2321, %v2319
        %v2368 = vpack.c.b16 %v2322, %v2320
        %v2369 = vpack.c.b16 %v2325, %v2323
        %v2370 = vpack.c.b16 %v2326, %v2324
        %v2371 = vpack.c.b16 %v2329, %v2327
        %v2372 = vpack.c.b16 %v2330, %v2328
        %v2373 = vpack.c.b16 %v2333, %v2331
        %v2374 = vpack.c.b16 %v2334, %v2332
        %v2375 = vpack.c.b16 %v2337, %v2335
        %v2376 = vpack.c.b16 %v2338, %v2336
        %v2377 = vpack.c.b16 %v2341, %v2339
        %v2378 = vpack.c.b16 %v2342, %v2340
        %v2379 = vpack.c.b16 %v2345, %v2343
        %v2380 = vpack.c.b16 %v2346, %v2344
        %v2381 = vpack.c.b16 %v2349, %v2347
        %v2382 = vpack.c.b16 %v2350, %v2348
        %v2447 = vunpack.c.l.b16 %v2211
        %v2448 = vunpack.c.h.b16 %v2211
        %v2449 = vunpack.c.l.b16 %v2212
        %v2450 = vunpack.c.h.b16 %v2212
        %v2451 = vunpack.c.l.b16 %v2213
        %v2452 = vunpack.c.h.b16 %v2213
        %v2453 = vunpack.c.l.b16 %v2214
        %v2454 = vunpack.c.h.b16 %v2214
        %v2455 = vunpack.c.l.b16 %v2215
        %v2456 = vunpack.c.h.b16 %v2215
        %v2457 = vunpack.c.l.b16 %v2216
        %v2458 = vunpack.c.h.b16 %v2216
        %v2459 = vunpack.c.l.b16 %v2217
        %v2460 = vunpack.c.h.b16 %v2217
        %v2461 = vunpack.c.l.b16 %v2218
        %v2462 = vunpack.c.h.b16 %v2218
        %v2463 = vunpack.c.l.b16 %v2219
        %v2464 = vunpack.c.h.b16 %v2219
        %v2465 = vunpack.c.l.b16 %v2220
        %v2466 = vunpack.c.h.b16 %v2220
        %v2467 = vunpack.c.l.b16 %v2221
        %v2468 = vunpack.c.h.b16 %v2221
        %v2469 = vunpack.c.l.b16 %v2222
        %v2470 = vunpack.c.h.b16 %v2222
        %v2471 = vunpack.c.l.b16 %v2223
        %v2472 = vunpack.c.h.b16 %v2223
        %v2473 = vunpack.c.l.b16 %v2224
        %v2474 = vunpack.c.h.b16 %v2224
        %v2475 = vunpack.c.l.b16 %v2225
        %v2476 = vunpack.c.h.b16 %v2225
        %v2477 = vunpack.c.l.b16 %v2226
        %v2478 = vunpack.c.h.b16 %v2226
        %v2479 = vunpack.c.l.b16 %v2227
        %v2480 = vunpack.c.h.b16 %v2227
        %v2481 = vunpack.c.l.b16 %v2228
        %v2482 = vunpack.c.h.b16 %v2228
        %v2483 = vunpack.c.l.b16 %v2229
        %v2484 = vunpack.c.h.b16 %v2229
        %v2485 = vunpack.c.l.b16 %v2230
        %v2486 = vunpack.c.h.b16 %v2230
        %v2487 = vunpack.c.l.b16 %v2231
        %v2488 = vunpack.c.h.b16 %v2231
        %v2489 = vunpack.c.l.b16 %v2232
        %v2490 = vunpack.c.h.b16 %v2232
        %v2491 = vunpack.c.l.b16 %v2233
        %v2492 = vunpack.c.h.b16 %v2233
        %v2493 = vunpack.c.l.b16 %v2234
        %v2494 = vunpack.c.h.b16 %v2234
        %v2495 = vunpack.c.l.b16 %v2235
        %v2496 = vunpack.c.h.b16 %v2235
        %v2497 = vunpack.c.l.b16 %v2236
        %v2498 = vunpack.c.h.b16 %v2236
        %v2499 = vunpack.c.l.b16 %v2237
        %v2500 = vunpack.c.h.b16 %v2237
        %v2501 = vunpack.c.l.b16 %v2238
        %v2502 = vunpack.c.h.b16 %v2238
        %v2503 = vunpack.c.l.b16 %v2239
        %v2504 = vunpack.c.h.b16 %v2239
        %v2505 = vunpack.c.l.b16 %v2240
        %v2506 = vunpack.c.h.b16 %v2240
        %v2507 = vunpack.c.l.b16 %v2241
        %v2508 = vunpack.c.h.b16 %v2241
        %v2509 = vunpack.c.l.b16 %v2242
        %v2510 = vunpack.c.h.b16 %v2242
        %v2511 = vpack.c.b16 %v2449, %v2447
        %v2512 = vpack.c.b16 %v2450, %v2448
        %v2513 = vpack.c.b16 %v2453, %v2451
        %v2514 = vpack.c.b16 %v2454, %v2452
        %v2515 = vpack.c.b16 %v2457, %v2455
        %v2516 = vpack.c.b16 %v2458, %v2456
        %v2517 = vpack.c.b16 %v2461, %v2459
        %v2518 = vpack.c.b16 %v2462, %v2460
        %v2519 = vpack.c.b16 %v2465, %v2463
        %v2520 = vpack.c.b16 %v2466, %v2464
        %v2521 = vpack.c.b16 %v2469, %v2467
        %v2522 = vpack.c.b16 %v2470, %v2468
        %v2523 = vpack.c.b16 %v2473, %v2471
        %v2524 = vpack.c.b16 %v2474, %v2472
        %v2525 = vpack.c.b16 %v2477, %v2475
        %v2526 = vpack.c.b16 %v2478, %v2476
        %v2527 = vpack.c.b16 %v2481, %v2479
        %v2528 = vpack.c.b16 %v2482, %v2480
        %v2529 = vpack.c.b16 %v2485, %v2483
        %v2530 = vpack.c.b16 %v2486, %v2484
        %v2531 = vpack.c.b16 %v2489, %v2487
        %v2532 = vpack.c.b16 %v2490, %v2488
        %v2533 = vpack.c.b16 %v2493, %v2491
        %v2534 = vpack.c.b16 %v2494, %v2492
        %v2535 = vpack.c.b16 %v2497, %v2495
        %v2536 = vpack.c.b16 %v2498, %v2496
        %v2537 = vpack.c.b16 %v2501, %v2499
        %v2538 = vpack.c.b16 %v2502, %v2500
        %v2539 = vpack.c.b16 %v2505, %v2503
        %v2540 = vpack.c.b16 %v2506, %v2504
        %v2541 = vpack.c.b16 %v2509, %v2507
        %v2542 = vpack.c.b16 %v2510, %v2508
        %2575 = vmatprep.subr.bf16.mxu0 %v2512
        %2576 = vmatpush1.bf16.msra.mxu0 %v2511
        %2577 = vmatprep.subr.bf16.mxu0 %v2514
        %2578 = vmatpush1.bf16.msra.mxu0 %v2513
        %2579 = vmatprep.subr.bf16.mxu0 %v2516
        %2580 = vmatpush1.bf16.msra.mxu0 %v2515
        %2581 = vmatprep.subr.bf16.mxu0 %v2518
        %2582 = vmatpush1.bf16.msra.mxu0 %v2517
        %2583 = vmatprep.subr.bf16.mxu0 %v2520
        %2584 = vmatpush1.bf16.msra.mxu0 %v2519
        %2585 = vmatprep.subr.bf16.mxu0 %v2522
        %2586 = vmatpush1.bf16.msra.mxu0 %v2521
        %2587 = vmatprep.subr.bf16.mxu0 %v2524
        %2588 = vmatpush1.bf16.msra.mxu0 %v2523
        %2589 = vmatprep.subr.bf16.mxu0 %v2526
        %2590 = vmatpush1.bf16.msra.mxu0 %v2525
        %2591 = vmatprep.subr.bf16.mxu0 %v2528
        %2592 = vmatpush1.bf16.msra.mxu0 %v2527
        %2593 = vmatprep.subr.bf16.mxu0 %v2530
        %2594 = vmatpush1.bf16.msra.mxu0 %v2529
        %2595 = vmatprep.subr.bf16.mxu0 %v2532
        %2596 = vmatpush1.bf16.msra.mxu0 %v2531
        %2597 = vmatprep.subr.bf16.mxu0 %v2534
        %2598 = vmatpush1.bf16.msra.mxu0 %v2533
        %2599 = vmatprep.subr.bf16.mxu0 %v2536
        %2600 = vmatpush1.bf16.msra.mxu0 %v2535
        %2601 = vmatprep.subr.bf16.mxu0 %v2538
        %2602 = vmatpush1.bf16.msra.mxu0 %v2537
        %2603 = vmatprep.subr.bf16.mxu0 %v2540
        %2604 = vmatpush1.bf16.msra.mxu0 %v2539
        %2605 = vmatprep.subr.bf16.mxu0 %v2542
        %2606 = vmatpush1.bf16.msra.mxu0 %v2541
        %2607 = vmatprep.mubr.bf16.mxu0 %v2352
        %2608 = vmatmul.mubr.bf16.gmra.mrb[0].mxu0 %v2351
        %v2609 = vpop.f32.mrb[0].mxu0
        %v2610 = vadd.f32 %v2248, %v2609
        %v2611 = vpop.f32.mrb[0].mxu0
        %v2612 = vadd.f32 %v2252, %v2611
        %v2613 = vpop.f32.mrb[0].mxu0
        %v2614 = vadd.f32 %v2248, %v2613
        %v2615 = vpop.f32.mrb[0].mxu0
        %v2616 = vadd.f32 %v2252, %v2615
        %2617 = vmatprep.mubr.bf16.mxu0 %v2354
        %2618 = vmatmul.mubr.bf16.gmra.mrb[0].mxu0 %v2353
        %v2619 = vpop.f32.mrb[0].mxu0
        %v2620 = vadd.f32 %v2248, %v2619
        %v2621 = vpop.f32.mrb[0].mxu0
        %v2622 = vadd.f32 %v2252, %v2621
        %v2623 = vpop.f32.mrb[0].mxu0
        %v2624 = vadd.f32 %v2248, %v2623
        %v2625 = vpop.f32.mrb[0].mxu0
        %v2626 = vadd.f32 %v2252, %v2625
        %2627 = vmatprep.mubr.bf16.mxu0 %v2356
        %2628 = vmatmul.mubr.bf16.gmra.mrb[0].mxu0 %v2355
        %v2629 = vpop.f32.mrb[0].mxu0
        %v2630 = vadd.f32 %v2248, %v2629
        %v2631 = vpop.f32.mrb[0].mxu0
        %v2632 = vadd.f32 %v2252, %v2631
        %v2633 = vpop.f32.mrb[0].mxu0
        %v2634 = vadd.f32 %v2248, %v2633
        %v2635 = vpop.f32.mrb[0].mxu0
        %v2636 = vadd.f32 %v2252, %v2635
        %2637 = vmatprep.mubr.bf16.mxu0 %v2358
        %2638 = vmatmul.mubr.bf16.gmra.mrb[0].mxu0 %v2357
        %v2639 = vpop.f32.mrb[0].mxu0
        %v2640 = vadd.f32 %v2248, %v2639
        %v2641 = vpop.f32.mrb[0].mxu0
        %v2642 = vadd.f32 %v2252, %v2641
        %v2643 = vpop.f32.mrb[0].mxu0
        %v2644 = vadd.f32 %v2248, %v2643
        %v2645 = vpop.f32.mrb[0].mxu0
        %v2646 = vadd.f32 %v2252, %v2645
        %2647 = vmatprep.mubr.bf16.mxu0 %v2360
        %2648 = vmatmul.mubr.bf16.gmra.mrb[0].mxu0 %v2359
        %v2649 = vpop.f32.mrb[0].mxu0
        %v2650 = vadd.f32 %v2248, %v2649
        %v2651 = vpop.f32.mrb[0].mxu0
        %v2652 = vadd.f32 %v2252, %v2651
        %v2653 = vpop.f32.mrb[0].mxu0
        %v2654 = vadd.f32 %v2248, %v2653
        %v2655 = vpop.f32.mrb[0].mxu0
        %v2656 = vadd.f32 %v2252, %v2655
        %2657 = vmatprep.mubr.bf16.mxu0 %v2362
        %2658 = vmatmul.mubr.bf16.gmra.mrb[0].mxu0 %v2361
        %v2659 = vpop.f32.mrb[0].mxu0
        %v2660 = vadd.f32 %v2248, %v2659
        %v2661 = vpop.f32.mrb[0].mxu0
        %v2662 = vadd.f32 %v2252, %v2661
        %v2663 = vpop.f32.mrb[0].mxu0
        %v2664 = vadd.f32 %v2248, %v2663
        %v2665 = vpop.f32.mrb[0].mxu0
        %v2666 = vadd.f32 %v2252, %v2665
        %2667 = vmatprep.mubr.bf16.mxu0 %v2364
        %2668 = vmatmul.mubr.bf16.gmra.mrb[0].mxu0 %v2363
        %v2669 = vpop.f32.mrb[0].mxu0
        %v2670 = vadd.f32 %v2248, %v2669
        %v2671 = vpop.f32.mrb[0].mxu0
        %v2672 = vadd.f32 %v2252, %v2671
        %v2673 = vpop.f32.mrb[0].mxu0
        %v2674 = vadd.f32 %v2248, %v2673
        %v2675 = vpop.f32.mrb[0].mxu0
        %v2676 = vadd.f32 %v2252, %v2675
        %2677 = vmatprep.mubr.bf16.mxu0 %v2366
        %2678 = vmatmul.mubr.bf16.gmra.mrb[0].mxu0 %v2365
        %v2679 = vpop.f32.mrb[0].mxu0
        %v2680 = vadd.f32 %v2248, %v2679
        %v2681 = vpop.f32.mrb[0].mxu0
        %v2682 = vadd.f32 %v2252, %v2681
        %v2683 = vpop.f32.mrb[0].mxu0
        %v2684 = vadd.f32 %v2248, %v2683
        %v2685 = vpop.f32.mrb[0].mxu0
        %v2686 = vadd.f32 %v2252, %v2685
        %2687 = vmatprep.mubr.bf16.mxu0 %v2368
        %2688 = vmatmul.mubr.bf16.gmra.mrb[0].mxu0 %v2367
        %v2689 = vpop.f32.mrb[0].mxu0
        %v2690 = vadd.f32 %v2248, %v2689
        %v2691 = vpop.f32.mrb[0].mxu0
        %v2692 = vadd.f32 %v2252, %v2691
        %v2693 = vpop.f32.mrb[0].mxu0
        %v2694 = vadd.f32 %v2248, %v2693
        %v2695 = vpop.f32.mrb[0].mxu0
        %v2696 = vadd.f32 %v2252, %v2695
        %2697 = vmatprep.mubr.bf16.mxu0 %v2370
        %2698 = vmatmul.mubr.bf16.gmra.mrb[0].mxu0 %v2369
        %v2699 = vpop.f32.mrb[0].mxu0
        %v2700 = vadd.f32 %v2248, %v2699
        %v2701 = vpop.f32.mrb[0].mxu0
        %v2702 = vadd.f32 %v2252, %v2701
        %v2703 = vpop.f32.mrb[0].mxu0
        %v2704 = vadd.f32 %v2248, %v2703
        %v2705 = vpop.f32.mrb[0].mxu0
        %v2706 = vadd.f32 %v2252, %v2705
        %2707 = vmatprep.mubr.bf16.mxu0 %v2372
        %2708 = vmatmul.mubr.bf16.gmra.mrb[0].mxu0 %v2371
        %v2709 = vpop.f32.mrb[0].mxu0
        %v2710 = vadd.f32 %v2248, %v2709
        %v2711 = vpop.f32.mrb[0].mxu0
        %v2712 = vadd.f32 %v2252, %v2711
        %v2713 = vpop.f32.mrb[0].mxu0
        %v2714 = vadd.f32 %v2248, %v2713
        %v2715 = vpop.f32.mrb[0].mxu0
        %v2716 = vadd.f32 %v2252, %v2715
        %2717 = vmatprep.mubr.bf16.mxu0 %v2374
        %2718 = vmatmul.mubr.bf16.gmra.mrb[0].mxu0 %v2373
        %v2719 = vpop.f32.mrb[0].mxu0
        %v2720 = vadd.f32 %v2248, %v2719
        %v2721 = vpop.f32.mrb[0].mxu0
        %v2722 = vadd.f32 %v2252, %v2721
        %v2723 = vpop.f32.mrb[0].mxu0
        %v2724 = vadd.f32 %v2248, %v2723
        %v2725 = vpop.f32.mrb[0].mxu0
        %v2726 = vadd.f32 %v2252, %v2725
        %2727 = vmatprep.mubr.bf16.mxu0 %v2376
        %2728 = vmatmul.mubr.bf16.gmra.mrb[0].mxu0 %v2375
        %v2729 = vpop.f32.mrb[0].mxu0
        %v2730 = vadd.f32 %v2248, %v2729
        %v2731 = vpop.f32.mrb[0].mxu0
        %v2732 = vadd.f32 %v2252, %v2731
        %v2733 = vpop.f32.mrb[0].mxu0
        %v2734 = vadd.f32 %v2248, %v2733
        %v2735 = vpop.f32.mrb[0].mxu0
        %v2736 = vadd.f32 %v2252, %v2735
        %2737 = vmatprep.mubr.bf16.mxu0 %v2378
        %2738 = vmatmul.mubr.bf16.gmra.mrb[0].mxu0 %v2377
        %v2739 = vpop.f32.mrb[0].mxu0
        %v2740 = vadd.f32 %v2248, %v2739
        %v2741 = vpop.f32.mrb[0].mxu0
        %v2742 = vadd.f32 %v2252, %v2741
        %v2743 = vpop.f32.mrb[0].mxu0
        %v2744 = vadd.f32 %v2248, %v2743
        %v2745 = vpop.f32.mrb[0].mxu0
        %v2746 = vadd.f32 %v2252, %v2745
        %2747 = vmatprep.mubr.bf16.mxu0 %v2380
        %2748 = vmatmul.mubr.bf16.gmra.mrb[0].mxu0 %v2379
        %v2749 = vpop.f32.mrb[0].mxu0
        %v2750 = vadd.f32 %v2248, %v2749
        %v2751 = vpop.f32.mrb[0].mxu0
        %v2752 = vadd.f32 %v2252, %v2751
        %v2753 = vpop.f32.mrb[0].mxu0
        %v2754 = vadd.f32 %v2248, %v2753
        %v2755 = vpop.f32.mrb[0].mxu0
        %v2756 = vadd.f32 %v2252, %v2755
        %2757 = vmatprep.mubr.bf16.mxu0 %v2382
        %2758 = vmatmul.mubr.bf16.gmra.mrb[0].mxu0 %v2381
        %v2759 = vpop.f32.mrb[0].mxu0
        %v2760 = vadd.f32 %v2248, %v2759
        %v2761 = vpop.f32.mrb[0].mxu0
        %v2762 = vadd.f32 %v2252, %v2761
        %v2763 = vpop.f32.mrb[0].mxu0
        %v2764 = vadd.f32 %v2248, %v2763
        %v2765 = vpop.f32.mrb[0].mxu0
        %v2766 = vadd.f32 %v2252, %v2765
        %2767 = vdwg.mxu0
        %v2768 = vpack.c.bf16 %v2614, %v2610
        %v2769 = vpack.c.bf16 %v2616, %v2612
        %v2770 = vpack.c.bf16 %v2624, %v2620
        %v2771 = vpack.c.bf16 %v2626, %v2622
        %v2772 = vpack.c.bf16 %v2634, %v2630
        %v2773 = vpack.c.bf16 %v2636, %v2632
        %v2774 = vpack.c.bf16 %v2644, %v2640
        %v2775 = vpack.c.bf16 %v2646, %v2642
        %v2776 = vpack.c.bf16 %v2654, %v2650
        %v2777 = vpack.c.bf16 %v2656, %v2652
        %v2778 = vpack.c.bf16 %v2664, %v2660
        %v2779 = vpack.c.bf16 %v2666, %v2662
        %v2780 = vpack.c.bf16 %v2674, %v2670
        %v2781 = vpack.c.bf16 %v2676, %v2672
        %v2782 = vpack.c.bf16 %v2684, %v2680
        %v2783 = vpack.c.bf16 %v2686, %v2682
        %v2784 = vpack.c.bf16 %v2694, %v2690
        %v2785 = vpack.c.bf16 %v2696, %v2692
        %v2786 = vpack.c.bf16 %v2704, %v2700
        %v2787 = vpack.c.bf16 %v2706, %v2702
        %v2788 = vpack.c.bf16 %v2714, %v2710
        %v2789 = vpack.c.bf16 %v2716, %v2712
        %v2790 = vpack.c.bf16 %v2724, %v2720
        %v2791 = vpack.c.bf16 %v2726, %v2722
        %v2792 = vpack.c.bf16 %v2734, %v2730
        %v2793 = vpack.c.bf16 %v2736, %v2732
        %v2794 = vpack.c.bf16 %v2744, %v2740
        %v2795 = vpack.c.bf16 %v2746, %v2742
        %v2796 = vpack.c.bf16 %v2754, %v2750
        %v2797 = vpack.c.bf16 %v2756, %v2752
        %v2798 = vpack.c.bf16 %v2764, %v2760
        %v2799 = vpack.c.bf16 %v2766, %v2762
        %v2832 = vunpack.c.l.b16 %v2768
        %v2833 = vunpack.c.l.b16 %v2769
        %v2834 = vunpack.c.h.b16 %v2768
        %v2835 = vunpack.c.h.b16 %v2769
        %v2836 = vunpack.c.l.b16 %v2770
        %v2837 = vunpack.c.l.b16 %v2771
        %v2838 = vunpack.c.h.b16 %v2770
        %v2839 = vunpack.c.h.b16 %v2771
        %v2840 = vunpack.c.l.b16 %v2772
        %v2841 = vunpack.c.l.b16 %v2773
        %v2842 = vunpack.c.h.b16 %v2772
        %v2843 = vunpack.c.h.b16 %v2773
        %v2844 = vunpack.c.l.b16 %v2774
        %v2845 = vunpack.c.l.b16 %v2775
        %v2846 = vunpack.c.h.b16 %v2774
        %v2847 = vunpack.c.h.b16 %v2775
        %v2848 = vunpack.c.l.b16 %v2776
        %v2849 = vunpack.c.l.b16 %v2777
        %v2850 = vunpack.c.h.b16 %v2776
        %v2851 = vunpack.c.h.b16 %v2777
        %v2852 = vunpack.c.l.b16 %v2778
        %v2853 = vunpack.c.l.b16 %v2779
        %v2854 = vunpack.c.h.b16 %v2778
        %v2855 = vunpack.c.h.b16 %v2779
        %v2856 = vunpack.c.l.b16 %v2780
        %v2857 = vunpack.c.l.b16 %v2781
        %v2858 = vunpack.c.h.b16 %v2780
        %v2859 = vunpack.c.h.b16 %v2781
        %v2860 = vunpack.c.l.b16 %v2782
        %v2861 = vunpack.c.l.b16 %v2783
        %v2862 = vunpack.c.h.b16 %v2782
        %v2863 = vunpack.c.h.b16 %v2783
        %v2864 = vunpack.c.l.b16 %v2784
        %v2865 = vunpack.c.l.b16 %v2785
        %v2866 = vunpack.c.h.b16 %v2784
        %v2867 = vunpack.c.h.b16 %v2785
        %v2868 = vunpack.c.l.b16 %v2786
        %v2869 = vunpack.c.l.b16 %v2787
        %v2870 = vunpack.c.h.b16 %v2786
        %v2871 = vunpack.c.h.b16 %v2787
        %v2872 = vunpack.c.l.b16 %v2788
        %v2873 = vunpack.c.l.b16 %v2789
        %v2874 = vunpack.c.h.b16 %v2788
        %v2875 = vunpack.c.h.b16 %v2789
        %v2876 = vunpack.c.l.b16 %v2790
        %v2877 = vunpack.c.l.b16 %v2791
        %v2878 = vunpack.c.h.b16 %v2790
        %v2879 = vunpack.c.h.b16 %v2791
        %v2880 = vunpack.c.l.b16 %v2792
        %v2881 = vunpack.c.l.b16 %v2793
        %v2882 = vunpack.c.h.b16 %v2792
        %v2883 = vunpack.c.h.b16 %v2793
        %v2884 = vunpack.c.l.b16 %v2794
        %v2885 = vunpack.c.l.b16 %v2795
        %v2886 = vunpack.c.h.b16 %v2794
        %v2887 = vunpack.c.h.b16 %v2795
        %v2888 = vunpack.c.l.b16 %v2796
        %v2889 = vunpack.c.l.b16 %v2797
        %v2890 = vunpack.c.h.b16 %v2796
        %v2891 = vunpack.c.h.b16 %v2797
        %v2892 = vunpack.c.l.b16 %v2798
        %v2893 = vunpack.c.l.b16 %v2799
        %v2894 = vunpack.c.h.b16 %v2798
        %v2895 = vunpack.c.h.b16 %v2799
        %v2896 = vpack.c.b16 %v2833, %v2832
        %v2897 = vpack.c.b16 %v2835, %v2834
        %v2898 = vpack.c.b16 %v2837, %v2836
        %v2899 = vpack.c.b16 %v2839, %v2838
        %v2900 = vpack.c.b16 %v2841, %v2840
        %v2901 = vpack.c.b16 %v2843, %v2842
        %v2902 = vpack.c.b16 %v2845, %v2844
        %v2903 = vpack.c.b16 %v2847, %v2846
        %v2904 = vpack.c.b16 %v2849, %v2848
        %v2905 = vpack.c.b16 %v2851, %v2850
        %v2906 = vpack.c.b16 %v2853, %v2852
        %v2907 = vpack.c.b16 %v2855, %v2854
        %v2908 = vpack.c.b16 %v2857, %v2856
        %v2909 = vpack.c.b16 %v2859, %v2858
        %v2910 = vpack.c.b16 %v2861, %v2860
        %v2911 = vpack.c.b16 %v2863, %v2862
        %v2912 = vpack.c.b16 %v2865, %v2864
        %v2913 = vpack.c.b16 %v2867, %v2866
        %v2914 = vpack.c.b16 %v2869, %v2868
        %v2915 = vpack.c.b16 %v2871, %v2870
        %v2916 = vpack.c.b16 %v2873, %v2872
        %v2917 = vpack.c.b16 %v2875, %v2874
        %v2918 = vpack.c.b16 %v2877, %v2876
        %v2919 = vpack.c.b16 %v2879, %v2878
        %v2920 = vpack.c.b16 %v2881, %v2880
        %v2921 = vpack.c.b16 %v2883, %v2882
        %v2922 = vpack.c.b16 %v2885, %v2884
        %v2923 = vpack.c.b16 %v2887, %v2886
        %v2924 = vpack.c.b16 %v2889, %v2888
        %v2925 = vpack.c.b16 %v2891, %v2890
        %v2926 = vpack.c.b16 %v2893, %v2892
        %v2927 = vpack.c.b16 %v2895, %v2894
        %2960 = vst [vmem:[%s546] sm:$0xff] %v2896
        %2961 = vst [vmem:[%s546 + $0x8] sm:$0xff] %v2897
        %2962 = vst [vmem:[%s546 + $0x10] sm:$0xff] %v2898
        %2963 = vst [vmem:[%s546 + $0x18] sm:$0xff] %v2899
        %2964 = vst [vmem:[%s546 + $0x20] sm:$0xff] %v2900
        %2965 = vst [vmem:[%s546 + $0x28] sm:$0xff] %v2901
        %2966 = vst [vmem:[%s546 + $0x30] sm:$0xff] %v2902
        %2967 = vst [vmem:[%s546 + $0x38] sm:$0xff] %v2903
        %2968 = vst [vmem:[%s546 + $0x40] sm:$0xff] %v2904
        %2969 = vst [vmem:[%s546 + $0x48] sm:$0xff] %v2905
        %2970 = vst [vmem:[%s546 + $0x50] sm:$0xff] %v2906
        %2971 = vst [vmem:[%s546 + $0x58] sm:$0xff] %v2907
        %2972 = vst [vmem:[%s546 + $0x60] sm:$0xff] %v2908
        %2973 = vst [vmem:[%s546 + $0x68] sm:$0xff] %v2909
        %2974 = vst [vmem:[%s546 + $0x70] sm:$0xff] %v2910
        %2975 = vst [vmem:[%s546 + $0x78] sm:$0xff] %v2911
        %2976 = vst [vmem:[%s546 + $0x80] sm:$0xff] %v2912
        %2977 = vst [vmem:[%s546 + $0x88] sm:$0xff] %v2913
        %2978 = vst [vmem:[%s546 + $0x90] sm:$0xff] %v2914
        %2979 = vst [vmem:[%s546 + $0x98] sm:$0xff] %v2915
        %2980 = vst [vmem:[%s546 + $0xa0] sm:$0xff] %v2916
        %2981 = vst [vmem:[%s546 + $0xa8] sm:$0xff] %v2917
        %2982 = vst [vmem:[%s546 + $0xb0] sm:$0xff] %v2918
        %2983 = vst [vmem:[%s546 + $0xb8] sm:$0xff] %v2919
        %2984 = vst [vmem:[%s546 + $0xc0] sm:$0xff] %v2920
        %2985 = vst [vmem:[%s546 + $0xc8] sm:$0xff] %v2921
        %2986 = vst [vmem:[%s546 + $0xd0] sm:$0xff] %v2922
        %2987 = vst [vmem:[%s546 + $0xd8] sm:$0xff] %v2923
        %2988 = vst [vmem:[%s546 + $0xe0] sm:$0xff] %v2924
        %2989 = vst [vmem:[%s546 + $0xe8] sm:$0xff] %v2925
        %2990 = vst [vmem:[%s546 + $0xf0] sm:$0xff] %v2926
        %2991 = vst [vmem:[%s546 + $0xf8] sm:$0xff] %v2927
        %s2992 = sand.u32 %s249, 1
        %s2993 = scalar_lea.sflag [#allocation4], %s2992
        %s2994 = sand.u32 %s249, 1
        %s2995 = smul.addr %s2994, 256
        %s2996 = scalar_lea.vmem [#allocation13], %s2995
        %s2997 = sand.u32 %s37, 1
        %s2998 = scalar_lea.sflag [#allocation15], %s2997
        %s2999 = sand.u32 %s275, 1
        %s3000 = smul.addr %s2999, 256
        %s3001 = scalar_lea.vmem [#allocation14], %s3000
        %s3002 = sand.u32 %s37, 1
        %s3003 = scalar_lea.sflag [#allocation15], %s3002
        %s3004 = sand.u32 %s301, 1
        %s3005 = smul.addr %s3004, 256
        %s3006 = scalar_lea.vmem [#allocation16], %s3005
        // Predicated region
        $region81: #{tpu_custom_call.1} parent=55 // pred_check
          %p3007 = pneg %p259
        $region82: #{tpu_custom_call.1} parent=55 // pred_check_branch
          %3009 = sbr.rel (%p3007) target = $region84
        $region83: #{tpu_custom_call.1} parent=55 // pred_region
          %s3010 = smul.u32 32, %s37
          %s3012 = ssub.s32 4096, 4096
          %3013 = vsyncadd %s2993, %s3012
          %s3014 = smul.addr %s3010, 2
          %s3015 = smul.addr %s3014, 64
          %s3016 = scalar_lea.hbm %s9, %s3015
          %s3017 = sshll.u32 %s2996, 4
          %s3018 = int_to_ptr.vmem [resolvable:$true] %s3017
          %3023 = dma.vmem_to_hbm [thread:$0]  %s3018, 4096, %s3016, %s2993, 128, 128, 8
        $region84: #{tpu_custom_call.1} parent=55 // pred_fallthru
          _
        // Predicated region
        $region85: #{tpu_custom_call.1} parent=55 // pred_check
          %p3024 = pneg %p285
        $region86: #{tpu_custom_call.1} parent=55 // pred_check_branch
          %3026 = sbr.rel (%p3024) target = $region88
        $region87: #{tpu_custom_call.1} parent=55 // pred_region
          %s3027 = smul.u32 32, %s37
          %s3029 = ssub.s32 4096, 4096
          %3030 = vsyncadd %s2998, %s3029
          %s3031 = smul.addr %s3027, 2
          %s3032 = smul.addr %s3031, 64
          %s3033 = scalar_lea.hbm %s10, %s3032
          %s3034 = sshll.u32 %s3001, 4
          %s3035 = int_to_ptr.vmem [resolvable:$true] %s3034
          %3040 = dma.vmem_to_hbm [thread:$0]  %s3035, 4096, %s3033, %s2998, 128, 128, 8
        $region88: #{tpu_custom_call.1} parent=55 // pred_fallthru
          _
        // Predicated region
        $region89: #{tpu_custom_call.1} parent=55 // pred_check
          %p3041 = pneg %p311
        $region90: #{tpu_custom_call.1} parent=55 // pred_check_branch
          %3043 = sbr.rel (%p3041) target = $region92
        $region91: #{tpu_custom_call.1} parent=55 // pred_region
          %s3044 = smul.u32 32, %s37
          %s3046 = ssub.s32 4096, 4096
          %3047 = vsyncadd %s3003, %s3046
          %s3048 = smul.addr %s3044, 2
          %s3049 = smul.addr %s3048, 64
          %s3050 = scalar_lea.hbm %s11, %s3049
          %s3051 = sshll.u32 %s3006, 4
          %s3052 = int_to_ptr.vmem [resolvable:$true] %s3051
          %3057 = dma.vmem_to_hbm [thread:$0]  %s3052, 4096, %s3050, %s3003, 128, 128, 8
        $region92: #{tpu_custom_call.1} parent=55 // pred_fallthru
          _
      $region56: #{tpu_custom_call.1} parent=5 // pred_fallthru
        _
      %p3058 = scmp.le.s32.totalorder 2, %s32
      // Predicated region
      $region93: #{tpu_custom_call.1} parent=5 // pred_check
        %p3059 = pneg %p3058
      $region94: #{tpu_custom_call.1} parent=5 // pred_check_branch
        %3061 = sbr.rel (%p3059) target = $region96
      $region95: #{tpu_custom_call.1} parent=5 // pred_region
        %s3062 = ssub.s32 %s32, 2
        // Predicated region
        $region97: #{tpu_custom_call.1} parent=95 // pred_check
          %p3063 = pneg %p265
        $region98: #{tpu_custom_call.1} parent=95 // pred_check_branch
          %3065 = sbr.rel (%p3063) target = $region100
        $region99: #{tpu_custom_call.1} parent=95 // pred_region
          %s3066 = sand.u32 %s250, 1
          %s3067 = scalar_lea.sflag [#allocation4], %s3066
          %s3068 = sand.u32 %s250, 1
          %s3069 = smul.addr %s3068, 256
          %s3070 = scalar_lea.vmem [#allocation13], %s3069
          %3071 = dma.done %s3067, 4096
        $region100: #{tpu_custom_call.1} parent=95 // pred_fallthru
          _
        // Predicated region
        $region101: #{tpu_custom_call.1} parent=95 // pred_check
          %p3072 = pneg %p291
        $region102: #{tpu_custom_call.1} parent=95 // pred_check_branch
          %3074 = sbr.rel (%p3072) target = $region104
        $region103: #{tpu_custom_call.1} parent=95 // pred_region
          %s3075 = sand.u32 %s38, 1
          %s3076 = scalar_lea.sflag [#allocation15], %s3075
          %s3077 = sand.u32 %s276, 1
          %s3078 = smul.addr %s3077, 256
          %s3079 = scalar_lea.vmem [#allocation14], %s3078
          %3080 = dma.done %s3076, 4096
        $region104: #{tpu_custom_call.1} parent=95 // pred_fallthru
          _
        // Predicated region
        $region105: #{tpu_custom_call.1} parent=95 // pred_check
          %p3081 = pneg %p317
        $region106: #{tpu_custom_call.1} parent=95 // pred_check_branch
          %3083 = sbr.rel (%p3081) target = $region108
        $region107: #{tpu_custom_call.1} parent=95 // pred_region
          %s3084 = sand.u32 %s38, 1
          %s3085 = scalar_lea.sflag [#allocation15], %s3084
          %s3086 = sand.u32 %s302, 1
          %s3087 = smul.addr %s3086, 256
          %s3088 = scalar_lea.vmem [#allocation16], %s3087
          %3089 = dma.done %s3085, 4096
        $region108: #{tpu_custom_call.1} parent=95 // pred_fallthru
          _
      $region96: #{tpu_custom_call.1} parent=5 // pred_fallthru
        _
    $region6: #{tpu_custom_call.1} parent=1 // loop_footer
      %s36 = sadd.s32 1, %s32
    $region7: #{tpu_custom_call.1} parent=1 // loop_footer_branch
      %31 = sbr.rel target = $region3
    $region8: #{tpu_custom_call.1} parent=1 // loop_exit
      _
    %3090 = vsyncpa [#allocation3], 1
    %s3091 = scalar_lea.sflag [#allocation3], 1
    %3092 = vsyncpa %s3091, 1
    %3093 = vsyncpa [#allocation6], 1
    %s3094 = scalar_lea.sflag [#allocation6], 1
    %3095 = vsyncpa %s3094, 1
    %3096 = vsyncpa [#allocation9], 1
    %3097 = vsyncpa [#allocation12], 1
    %3098 = vsyncpa [#allocation4], 1
    %s3099 = scalar_lea.sflag [#allocation4], 1
    %3100 = vsyncpa %s3099, 1
    %3101 = vsyncpa [#allocation15], 1
    %s3102 = scalar_lea.sflag [#allocation15], 1
    %3103 = vsyncpa %s3102, 1

</llo_original>
